<compile_context>
chip_gen: v7x
topology: tpu7x:2x2x1
jax: 0.10.0
libtpu: 0.0.40
codegen_flags: <defaults>
</compile_context>

<pallas_src>
import functools

import numpy as np
import jax
import jax.numpy as jnp
from jax.experimental import pallas as pl
from jax.experimental.pallas import tpu as pltpu

BN_EPS = 1e-5


def _st_gcn_kernel(x_ref, gw_ref, sc_ref, wt_ref, *rest,
                   nb, T, T_out, VCo, Kt, stride, pad, residual_mode, fuse_res):
    """One grid step = `nb` samples; two lane-dense 2-D MXU matmuls (GCN[+res], TCN)."""
    if residual_mode == "conv" and not fuse_res:
        wr_ref, out_ref, zbuf_ref = rest
    else:
        out_ref, zbuf_ref = rest

    x = x_ref[...]                                       # (nb, T, VCi_pad) bf16
    vci_pad = x.shape[-1]
    xf = x.reshape(nb * T, vci_pad)
    sc = sc_ref[...]                                     # (8, VCo) f32 scale/shift table

    # ---- GCN (channel mix + spatial aggregation) [+ fused 1x1 residual] ----
    zr = jnp.dot(xf, gw_ref[...], preferred_element_type=jnp.float32)
    if fuse_res:
        z = zr[:, :VCo]
        res = zr[:, VCo:] * sc[4:5, :] + sc[5:6, :]      # residual BN (+bias folded)
    else:
        z = zr
    # BN1 (GCN bias pre-folded into the shift row) + ReLU; cast to bf16 ONCE.
    z = jnp.maximum(z * sc[0:1, :] + sc[1:2, :], 0.0)
    z_bf = z.astype(jnp.bfloat16).reshape(nb, T, VCo)

    # ---- temporal conv (Kt,1), stride (stride,1), zero pad along T ----------
    # Persistent VMEM scratch holds the zero-padded activations; pad rows are
    # re-zeroed every step (2*pad rows — negligible, and safe under megacore
    # grid splitting); the Kt taps are ref-level (strided) loads that are
    # lane-concatenated into ONE deep-K matmul LHS.
    if pad > 0:
        zpad = jnp.zeros((nb, pad, VCo), jnp.bfloat16)
        zbuf_ref[:, pl.ds(0, pad), :] = zpad
        zbuf_ref[:, pl.ds(pad + T, pad), :] = zpad
    zbuf_ref[:, pl.ds(pad, T), :] = z_bf

    taps = []
    for dt in range(Kt):
        if stride == 1:
            taps.append(zbuf_ref[:, pl.ds(dt, T_out), :])
        else:
            taps.append(zbuf_ref[:, pl.ds(dt, T_out, stride=stride), :])
    lhs = taps[0] if Kt == 1 else jnp.concatenate(taps, axis=-1)   # (nb,T_out,Kt*VCo)
    acc = jnp.dot(lhs.reshape(nb * T_out, Kt * VCo), wt_ref[...],
                  preferred_element_type=jnp.float32)              # (nb*T_out, VCo)
    # BN2 (TCN bias pre-folded into the shift row); Dropout(p=0) == identity
    acc = acc * sc[2:3, :] + sc[3:4, :]

    # ---- residual branch ----------------------------------------------------
    if residual_mode == "zero":
        out = acc
    elif residual_mode == "identity":                    # C_in==C_out, stride==1
        out = acc + xf[:, :VCo].astype(jnp.float32)
    elif fuse_res:                                       # conv residual, stride==1
        out = acc + res
    else:                                                # conv residual, stride>1
        xs = x_ref[:, pl.ds(0, T_out, stride=stride), :]          # strided ref read
        r = jnp.dot(xs.reshape(nb * T_out, vci_pad), wr_ref[...],
                    preferred_element_type=jnp.float32)
        out = acc + r * sc[4:5, :] + sc[5:6, :]

    out_ref[...] = jnp.maximum(out, 0.0).reshape(nb, T_out, VCo).astype(out_ref.dtype)


def _pick_samples_per_step(N, per_sample_bytes, resident_bytes, vmem_budget):
    """Largest divisor of N that fits the VMEM budget and keeps >= 2 grid steps."""
    if N <= 1:
        return 1
    cap_grid = max(1, N // 2)                  # >= 2 grid steps (2 TCs on v7x)
    avail = max(vmem_budget - resident_bytes, per_sample_bytes)
    cap_vmem = max(1, int(avail // per_sample_bytes))
    cap = int(min(N, cap_grid, cap_vmem))
    return max(d for d in range(1, cap + 1) if N % d == 0)


def st_gcn_block_forward(x_nctv, edge, params, *, stride=1, residual=True,
                         samples_per_step=None, out_dtype=jnp.float32):
    """x_nctv: (N, C_in, T, V) float32; edge: (K, V, V). Returns (N, C_out, T_out, V)."""
    N, C_in, T, V = x_nctv.shape
    A = params["A"]                                      # (K, V, V)
    K = A.shape[0]
    wgcn = params["gcn_w"]                               # (K*C_out, C_in)
    C_out = wgcn.shape[0] // K
    wt = params["tcn_w"]                                 # (Kt, C_out, C_out): [dt, c_in, c_out]
    Kt = wt.shape[0]
    pad = (Kt - 1) // 2
    T_out = (T + 2 * pad - Kt) // stride + 1
    VCi, VCo = V * C_in, V * C_out
    VCi_pad = ((VCi + 127) // 128) * 128                 # lane-dense x minor dim

    if not residual:
        residual_mode = "zero"
    elif C_in == C_out and stride == 1:
        residual_mode = "identity"
    else:
        residual_mode = "conv"
    fuse_res = (residual_mode == "conv" and stride == 1)

    f32 = jnp.float32
    A_eff = (A * edge).astype(f32)                       # host-side, grid-invariant

    # ---- fold the whole GCN (channel conv + spatial aggregation) into one matrix ----
    Wg = wgcn.reshape(K, C_out, C_in).astype(f32)        # [k, c_out, c_in]
    G = jnp.einsum('kvw,koi->viwo', A_eff, Wg).reshape(VCi, VCo)
    G = jnp.pad(G, ((0, VCi_pad - VCi), (0, 0)))         # zero rows for padded x lanes

    def fold_bn(g, b, m, v):
        s = g.astype(f32) / jnp.sqrt(v.astype(f32) + BN_EPS)
        return s, b.astype(f32) - m.astype(f32) * s

    s1, sh1 = fold_bn(params["bn1_g"], params["bn1_b"], params["bn1_m"], params["bn1_v"])
    s2, sh2 = fold_bn(params["bn2_g"], params["bn2_b"], params["bn2_m"], params["bn2_v"])

    # GCN bias folded through the spatial aggregation into BN1's shift (scaled by s1).
    bg = params["gcn_b"].reshape(K, C_out).astype(f32)
    colsum = A_eff.sum(axis=1)                           # (K, W) = sum_v A_eff[k, v, w]
    bias_eff = jnp.einsum('kw,ko->wo', colsum, bg)       # (W, C_out)
    bt = params["tcn_b"].astype(f32)

    eye_v = jnp.eye(V, dtype=f32)
    # V-block-diagonal temporal weights, stacked over taps for ONE deep-K matmul.
    Wt_stack = jnp.einsum('vw,tcd->tvcwd', eye_v, wt.astype(f32)).reshape(Kt * VCo, VCo)

    Wr = None
    if residual_mode == "conv":
        sr, shr = fold_bn(params["bnr_g"], params["bnr_b"],
                          params["bnr_m"], params["bnr_v"])
        br = params["res_b"].astype(f32)
        Wr = jnp.einsum('vw,cd->vcwd', eye_v,
                        params["res_w"].astype(f32)).reshape(VCi, VCo)
        Wr = jnp.pad(Wr, ((0, VCi_pad - VCi), (0, 0)))

    rows = [jnp.tile(s1, V),
            (sh1[None, :] + s1[None, :] * bias_eff).reshape(VCo),
            jnp.tile(s2, V),
            jnp.tile(sh2 + s2 * bt, V)]
    if residual_mode == "conv":
        rows += [jnp.tile(sr, V), jnp.tile(shr + sr * br, V)]
    else:
        rows += [jnp.zeros((VCo,), f32)] * 2
    rows += [jnp.zeros((VCo,), f32)] * 2
    sc = jnp.stack(rows, axis=0)                         # (8, V*C_out) packed scale/shift

    bf16 = jnp.bfloat16
    if fuse_res:
        gw = jnp.concatenate([G, Wr], axis=1).astype(bf16)   # (VCi_pad, 2*VCo)
        wr_in = None
    else:
        gw = G.astype(bf16)
        wr_in = Wr.astype(bf16) if Wr is not None else None
    wt_in = Wt_stack.astype(bf16)

    # channels-last, (v, c_in) merged + zero-padded to a lane-dense minor dim;
    # bf16 in HBM (matmuls were already bf16; halves input DMA bytes).
    x_cl = jnp.transpose(x_nctv, (0, 2, 3, 1)).reshape(N, T, VCi)
    if VCi_pad != VCi:
        x_cl = jnp.pad(x_cl, ((0, 0), (0, 0), (0, VCi_pad - VCi)))
    x_flat = x_cl.astype(bf16)

    # ---- per-generation resource policy -------------------------------------
    try:
        phys_vmem = int(pltpu.get_tpu_info().vmem_capacity_bytes)
    except Exception:
        phys_vmem = 64 << 20                             # conservative (v7x) fallback
    vmem_budget = (phys_vmem * 3) // 4                   # headroom for compiler temps

    Tp = T + 2 * pad
    n_gw_cols = gw.shape[1]
    w_bytes = (gw.size + wt_in.size
               + (wr_in.size if wr_in is not None else 0)) * 2 + sc.size * 4
    resident = 2 * w_bytes                               # worst case: double-buffered
    per_sample = (2 * T * VCi_pad * 2                    # x block (bf16, double-buffered)
                  + 2 * T_out * VCo * 4                  # out block (f32, double-buffered)
                  + Tp * VCo * 2                         # zbuf scratch (bf16)
                  + T * n_gw_cols * 4                    # zr (f32)
                  + T * VCo * 6                          # z f32 + z bf16
                  + T_out * Kt * VCo * 2                 # fused-tap LHS (bf16)
                  + 3 * T_out * VCo * 4)                 # acc / res / out temps (f32)
    per_sample = int(per_sample * 1.5) + 1024            # relayout / spill slack

    if samples_per_step is not None:
        nb = samples_per_step
    else:
        nb = _pick_samples_per_step(N, per_sample, resident, vmem_budget)
    assert N % nb == 0, "samples_per_step must divide N"

    est = resident + nb * per_sample + (1 << 20)
    vmem_limit = int(min(vmem_budget, max(2 * est, 8 << 20)))   # no 32 MiB floor

    kernel = functools.partial(
        _st_gcn_kernel, nb=nb, T=T, T_out=T_out, VCo=VCo, Kt=Kt, stride=stride,
        pad=pad, residual_mode=residual_mode, fuse_res=fuse_res)

    def call(single_buffer_weights):
        def inv_spec(arr):
            nd = arr.ndim
            idx = lambda n, _nd=nd: (0,) * _nd
            if single_buffer_weights:
                # grid-invariant weights: no double-buffer VMEM allocation
                return pl.BlockSpec(arr.shape, idx, pipeline_mode=pl.Buffered(1))
            return pl.BlockSpec(arr.shape, idx)

        inputs = [x_flat, gw, sc, wt_in]
        in_specs = [pl.BlockSpec((nb, T, VCi_pad), lambda n: (n, 0, 0)),
                    inv_spec(gw), inv_spec(sc), inv_spec(wt_in)]
        if wr_in is not None:
            inputs.append(wr_in)
            in_specs.append(inv_spec(wr_in))

        grid_spec = pltpu.PrefetchScalarGridSpec(
            num_scalar_prefetch=0,
            grid=(N // nb,),
            in_specs=in_specs,
            out_specs=pl.BlockSpec((nb, T_out, VCo), lambda n: (n, 0, 0)),
            scratch_shapes=[pltpu.VMEM((nb, Tp, VCo), jnp.bfloat16)])

        return pl.pallas_call(
            kernel,
            out_shape=jax.ShapeDtypeStruct((N, T_out, VCo), out_dtype),
            grid_spec=grid_spec,
            compiler_params=pltpu.CompilerParams(
                dimension_semantics=("parallel",),
                vmem_limit_bytes=vmem_limit),
        )(*inputs)

    try:
        out_flat = call(True)
    except Exception:
        # pl.Buffered(1) (single-buffered invariant weights) not supported on this
        # jax/libtpu combination -> fall back to default double buffering.
        out_flat = call(False)

    # back to PyTorch NCHW: (N, C_out, T_out, V)
    return jnp.transpose(out_flat.reshape(N, T_out, V, C_out), (0, 3, 1, 2))


def st_gcn_block_reference(x, edge, params, *, stride=1, residual=True):
    """Pure-JAX reference matching the PyTorch forward (inference-mode BN)."""
    N, C_in, T, V = x.shape
    A = params["A"]
    K = A.shape[0]
    wgcn, bgcn = params["gcn_w"], params["gcn_b"]
    C_out = wgcn.shape[0] // K
    wt, bt = params["tcn_w"], params["tcn_b"]
    Kt = wt.shape[0]
    pad = (Kt - 1) // 2
    T_out = (T + 2 * pad - Kt) // stride + 1
    A_eff = A * edge

    def bn(z, g, b, m, v):
        return ((z - m[None, :, None, None]) / jnp.sqrt(v[None, :, None, None] + BN_EPS)
                * g[None, :, None, None] + b[None, :, None, None])

    y = jnp.einsum('mc,nctv->nmtv', wgcn, x) + bgcn[None, :, None, None]
    y = y.reshape(N, K, C_out, T, V)
    z = jnp.einsum('nkctv,kvw->nctw', y, A_eff)
    z = bn(z, params["bn1_g"], params["bn1_b"], params["bn1_m"], params["bn1_v"])
    z = jnp.maximum(z, 0.0)
    zp = jnp.pad(z, ((0, 0), (0, 0), (pad, pad), (0, 0)))
    out = jnp.zeros((N, C_out, T_out, V), jnp.float32)
    for dt in range(Kt):
        slab = zp[:, :, dt: dt + (T_out - 1) * stride + 1: stride, :]
        out = out + jnp.einsum('nctv,cd->ndtv', slab, wt[dt])
    out = out + bt[None, :, None, None]
    out = bn(out, params["bn2_g"], params["bn2_b"], params["bn2_m"], params["bn2_v"])

    if not residual:
        res = 0.0
    elif C_in == C_out and stride == 1:
        res = x
    else:
        xs = x[:, :, ::stride, :][:, :, :T_out, :]
        res = jnp.einsum('nctv,cd->ndtv', xs, params["res_w"]) + \
            params["res_b"][None, :, None, None]
        res = bn(res, params["bnr_g"], params["bnr_b"], params["bnr_m"], params["bnr_v"])
    return jnp.maximum(out + res, 0.0)


if __name__ == "__main__":
    N, C_in, C_out, T, V, K, Kt, stride = 2, 4, 8, 8, 16, 3, 3, 1

    key = jax.random.PRNGKey(0)
    ks = jax.random.split(key, 24)

    def u(k, shape, lo=-0.5, hi=0.5):
        return jax.random.uniform(k, shape, jnp.float32, lo, hi)

    params = dict(
        A=u(ks[0], (K, V, V)),
        gcn_w=u(ks[1], (K * C_out, C_in)),
        gcn_b=u(ks[2], (K * C_out,)),
        bn1_g=u(ks[3], (C_out,), 0.5, 1.5), bn1_b=u(ks[4], (C_out,)),
        bn1_m=u(ks[5], (C_out,)), bn1_v=u(ks[6], (C_out,), 0.5, 1.5),
        tcn_w=u(ks[7], (Kt, C_out, C_out)),       # [dt, c_in, c_out]
        tcn_b=u(ks[8], (C_out,)),
        bn2_g=u(ks[9], (C_out,), 0.5, 1.5), bn2_b=u(ks[10], (C_out,)),
        bn2_m=u(ks[11], (C_out,)), bn2_v=u(ks[12], (C_out,), 0.5, 1.5),
        res_w=u(ks[13], (C_in, C_out)),           # [c_in, c_out]
        res_b=u(ks[14], (C_out,)),
        bnr_g=u(ks[15], (C_out,), 0.5, 1.5), bnr_b=u(ks[16], (C_out,)),
        bnr_m=u(ks[17], (C_out,)), bnr_v=u(ks[18], (C_out,), 0.5, 1.5),
    )
    x = u(ks[19], (N, C_in, T, V), -1.0, 1.0)     # PyTorch NCHW: (N, C_in, T, V)
    edge = u(ks[20], (K, V, V), 0.0, 1.0)

    out = st_gcn_block_forward(x, edge, params, stride=stride, residual=True)
    out = jax.block_until_ready(out)

    ref = st_gcn_block_reference(x, edge, params, stride=stride, residual=True)
    np.testing.assert_allclose(np.asarray(out), np.asarray(ref), rtol=3e-2, atol=3e-2)

    print("KERNEL_OK")
</pallas_src>

<mosaic_0001>
module attributes {stable_mosaic.version = 11 : i64} {
  func.func @_st_gcn_kernel(%arg0: i32, %arg1: memref<1x8x128xbf16, #tpu.memory_space<vmem>>, %arg2: memref<128x256xbf16, #tpu.memory_space<vmem>>, %arg3: memref<8x128xf32, #tpu.memory_space<vmem>>, %arg4: memref<384x128xbf16, #tpu.memory_space<vmem>>, %arg5: memref<1x8x128xf32, #tpu.memory_space<vmem>>, %arg6: memref<1x10x128xbf16, #tpu.memory_space<vmem>>) attributes {dimension_semantics = [#tpu.dimension_semantics<parallel>], iteration_bounds = array<i64: 2>, scalar_prefetch = 0 : i64, scratch_operands = 1 : i64, tpu.core_type = #tpu.core_type<tc>, window_params = [{transform_indices = @transform_0, window_bounds = array<i64: 1, 8, 128>}, {pipeline_mode = #tpu.pipeline_mode<synchronous>, transform_indices = @transform_1, window_bounds = array<i64: 128, 256>}, {pipeline_mode = #tpu.pipeline_mode<synchronous>, transform_indices = @transform_2, window_bounds = array<i64: 8, 128>}, {pipeline_mode = #tpu.pipeline_mode<synchronous>, transform_indices = @transform_3, window_bounds = array<i64: 384, 128>}, {transform_indices = @transform_4, window_bounds = array<i64: 1, 8, 128>}]} {
    %c0 = arith.constant 0 : index
    %c0_0 = arith.constant 0 : index
    %c0_1 = arith.constant 0 : index
    %0 = vector.load %arg1[%c0, %c0_0, %c0_1] : memref<1x8x128xbf16, #tpu.memory_space<vmem>>, vector<1x8x128xbf16>
    %1 = vector.shape_cast %0 : vector<1x8x128xbf16> to vector<8x128xbf16>
    %c0_2 = arith.constant 0 : index
    %c0_3 = arith.constant 0 : index
    %2 = vector.load %arg3[%c0_2, %c0_3] : memref<8x128xf32, #tpu.memory_space<vmem>>, vector<8x128xf32>
    %c0_4 = arith.constant 0 : index
    %c0_5 = arith.constant 0 : index
    %3 = vector.load %arg2[%c0_4, %c0_5] : memref<128x256xbf16, #tpu.memory_space<vmem>>, vector<128x256xbf16>
    %cst = arith.constant dense<0.000000e+00> : vector<8x256xf32>
    %4 = tpu.matmul %1, %3, %cst {dimension_numbers = #tpu.dot_dimension_numbers<[1], [0], [0], [1], [0, 0, 1, 1], [], []>} : vector<8x128xbf16>, vector<128x256xbf16>, vector<8x256xf32> -> vector<8x256xf32>
    %5 = vector.extract_strided_slice %4 {offsets = [0, 0], sizes = [8, 128], strides = [1, 1]} : vector<8x256xf32> to vector<8x128xf32>
    %6 = vector.extract_strided_slice %4 {offsets = [0, 128], sizes = [8, 128], strides = [1, 1]} : vector<8x256xf32> to vector<8x128xf32>
    %7 = vector.extract_strided_slice %2 {offsets = [4, 0], sizes = [1, 128], strides = [1, 1]} : vector<8x128xf32> to vector<1x128xf32>
    %8 = vector.broadcast %7 : vector<1x128xf32> to vector<8x128xf32>
    %9 = arith.mulf %6, %8 : vector<8x128xf32>
    %10 = vector.extract_strided_slice %2 {offsets = [5, 0], sizes = [1, 128], strides = [1, 1]} : vector<8x128xf32> to vector<1x128xf32>
    %11 = vector.broadcast %10 : vector<1x128xf32> to vector<8x128xf32>
    %12 = arith.addf %9, %11 : vector<8x128xf32>
    %13 = vector.extract_strided_slice %2 {offsets = [0, 0], sizes = [1, 128], strides = [1, 1]} : vector<8x128xf32> to vector<1x128xf32>
    %14 = vector.broadcast %13 : vector<1x128xf32> to vector<8x128xf32>
    %15 = arith.mulf %5, %14 : vector<8x128xf32>
    %16 = vector.extract_strided_slice %2 {offsets = [1, 0], sizes = [1, 128], strides = [1, 1]} : vector<8x128xf32> to vector<1x128xf32>
    %17 = vector.broadcast %16 : vector<1x128xf32> to vector<8x128xf32>
    %18 = arith.addf %15, %17 : vector<8x128xf32>
    %cst_6 = arith.constant 0.000000e+00 : f32
    %19 = vector.broadcast %cst_6 : f32 to vector<8x128xf32>
    %20 = arith.maximumf %18, %19 : vector<8x128xf32>
    %21 = arith.truncf %20 : vector<8x128xf32> to vector<8x128xbf16>
    %22 = vector.shape_cast %21 : vector<8x128xbf16> to vector<1x8x128xbf16>
    %cst_7 = arith.constant 0.000000e+00 : bf16
    %23 = vector.broadcast %cst_7 : bf16 to vector<1x1x128xbf16>
    %c0_8 = arith.constant 0 : index
    %c0_9 = arith.constant 0 : index
    %c0_10 = arith.constant 0 : index
    %24 = vector.load %arg6[%c0_8, %c0_9, %c0_10] : memref<1x10x128xbf16, #tpu.memory_space<vmem>>, vector<1x1x128xbf16>
    tpu.vector_store %arg6[%c0_8, %c0_9, %c0_10], %23 {strides = array<i32>} : memref<1x10x128xbf16, #tpu.memory_space<vmem>>, vector<1x1x128xbf16>,
    %c0_11 = arith.constant 0 : index
    %c9 = arith.constant 9 : index
    %c0_12 = arith.constant 0 : index
    %25 = vector.load %arg6[%c0_11, %c9, %c0_12] : memref<1x10x128xbf16, #tpu.memory_space<vmem>>, vector<1x1x128xbf16>
    tpu.vector_store %arg6[%c0_11, %c9, %c0_12], %23 {strides = array<i32>} : memref<1x10x128xbf16, #tpu.memory_space<vmem>>, vector<1x1x128xbf16>,
    %c0_13 = arith.constant 0 : index
    %c1 = arith.constant 1 : index
    %c0_14 = arith.constant 0 : index
    %26 = vector.load %arg6[%c0_13, %c1, %c0_14] : memref<1x10x128xbf16, #tpu.memory_space<vmem>>, vector<1x8x128xbf16>
    tpu.vector_store %arg6[%c0_13, %c1, %c0_14], %22 {strides = array<i32>} : memref<1x10x128xbf16, #tpu.memory_space<vmem>>, vector<1x8x128xbf16>,
    %c0_15 = arith.constant 0 : index
    %c0_16 = arith.constant 0 : index
    %c0_17 = arith.constant 0 : index
    %27 = vector.load %arg6[%c0_15, %c0_16, %c0_17] : memref<1x10x128xbf16, #tpu.memory_space<vmem>>, vector<1x8x128xbf16>
    %c0_18 = arith.constant 0 : index
    %c1_19 = arith.constant 1 : index
    %c0_20 = arith.constant 0 : index
    %28 = vector.load %arg6[%c0_18, %c1_19, %c0_20] : memref<1x10x128xbf16, #tpu.memory_space<vmem>>, vector<1x8x128xbf16>
    %c0_21 = arith.constant 0 : index
    %c2 = arith.constant 2 : index
    %c0_22 = arith.constant 0 : index
    %29 = vector.load %arg6[%c0_21, %c2, %c0_22] : memref<1x10x128xbf16, #tpu.memory_space<vmem>>, vector<1x8x128xbf16>
    %30 = tpu.concatenate %27, %28, %29 in 2 : vector<1x8x128xbf16>, vector<1x8x128xbf16>, vector<1x8x128xbf16> -> vector<1x8x384xbf16>
    %31 = vector.shape_cast %30 : vector<1x8x384xbf16> to vector<8x384xbf16>
    %c0_23 = arith.constant 0 : index
    %c0_24 = arith.constant 0 : index
    %32 = vector.load %arg4[%c0_23, %c0_24] : memref<384x128xbf16, #tpu.memory_space<vmem>>, vector<384x128xbf16>
    %cst_25 = arith.constant dense<0.000000e+00> : vector<8x128xf32>
    %33 = tpu.matmul %31, %32, %cst_25 {dimension_numbers = #tpu.dot_dimension_numbers<[1], [0], [0], [1], [0, 0, 1, 1], [], []>} : vector<8x384xbf16>, vector<384x128xbf16>, vector<8x128xf32> -> vector<8x128xf32>
    %34 = vector.extract_strided_slice %2 {offsets = [2, 0], sizes = [1, 128], strides = [1, 1]} : vector<8x128xf32> to vector<1x128xf32>
    %35 = vector.broadcast %34 : vector<1x128xf32> to vector<8x128xf32>
    %36 = arith.mulf %33, %35 : vector<8x128xf32>
    %37 = vector.extract_strided_slice %2 {offsets = [3, 0], sizes = [1, 128], strides = [1, 1]} : vector<8x128xf32> to vector<1x128xf32>
    %38 = vector.broadcast %37 : vector<1x128xf32> to vector<8x128xf32>
    %39 = arith.addf %36, %38 : vector<8x128xf32>
    %40 = arith.addf %39, %12 : vector<8x128xf32>
    %cst_26 = arith.constant 0.000000e+00 : f32
    %41 = vector.broadcast %cst_26 : f32 to vector<8x128xf32>
    %42 = arith.maximumf %40, %41 : vector<8x128xf32>
    %43 = vector.shape_cast %42 : vector<8x128xf32> to vector<1x8x128xf32>
    %c0_27 = arith.constant 0 : index
    %c0_28 = arith.constant 0 : index
    %c0_29 = arith.constant 0 : index
    %44 = vector.load %arg5[%c0_27, %c0_28, %c0_29] : memref<1x8x128xf32, #tpu.memory_space<vmem>>, vector<1x8x128xf32>
    tpu.vector_store %arg5[%c0_27, %c0_28, %c0_29], %43 {strides = array<i32>} : memref<1x8x128xf32, #tpu.memory_space<vmem>>, vector<1x8x128xf32>,
    return
  }
  func.func @transform_0(%arg0: i32) -> (i32, i32, i32) {
    %c0_i32 = arith.constant 0 : i32
    %c0_i32_0 = arith.constant 0 : i32
    %c0_i32_1 = arith.constant 0 : i32
    return %arg0, %c0_i32, %c0_i32_0 : i32, i32, i32
  }
  func.func @transform_1(%arg0: i32) -> (i32, i32) {
    %c0_i32 = arith.constant 0 : i32
    %c0_i32_0 = arith.constant 0 : i32
    %c0_i32_1 = arith.constant 0 : i32
    return %c0_i32, %c0_i32_0 : i32, i32
  }
  func.func @transform_2(%arg0: i32) -> (i32, i32) {
    %c0_i32 = arith.constant 0 : i32
    %c0_i32_0 = arith.constant 0 : i32
    %c0_i32_1 = arith.constant 0 : i32
    return %c0_i32, %c0_i32_0 : i32, i32
  }
  func.func @transform_3(%arg0: i32) -> (i32, i32) {
    %c0_i32 = arith.constant 0 : i32
    %c0_i32_0 = arith.constant 0 : i32
    %c0_i32_1 = arith.constant 0 : i32
    return %c0_i32, %c0_i32_0 : i32, i32
  }
  func.func @transform_4(%arg0: i32) -> (i32, i32, i32) {
    %c0_i32 = arith.constant 0 : i32
    %c0_i32_0 = arith.constant 0 : i32
    %c0_i32_1 = arith.constant 0 : i32
    return %arg0, %c0_i32, %c0_i32_0 : i32, i32, i32
  }
}

module attributes {stable_mosaic.version = 11 : i64} {
  func.func @_st_gcn_kernel(%arg0: i32, %arg1: memref<1x8x128xbf16, #tpu.memory_space<vmem>>, %arg2: memref<128x256xbf16, #tpu.memory_space<vmem>>, %arg3: memref<8x128xf32, #tpu.memory_space<vmem>>, %arg4: memref<384x128xbf16, #tpu.memory_space<vmem>>, %arg5: memref<1x8x128xf32, #tpu.memory_space<vmem>>, %arg6: memref<1x10x128xbf16, #tpu.memory_space<vmem>>) attributes {dimension_semantics = [#tpu.dimension_semantics<parallel>], iteration_bounds = array<i64: 2>, scalar_prefetch = 0 : i64, scratch_operands = 1 : i64, tpu.core_type = #tpu.core_type<tc>, window_params = [{transform_indices = @transform_0, window_bounds = array<i64: 1, 8, 128>}, {pipeline_mode = #tpu.pipeline_mode<synchronous>, transform_indices = @transform_1, window_bounds = array<i64: 128, 256>}, {pipeline_mode = #tpu.pipeline_mode<synchronous>, transform_indices = @transform_2, window_bounds = array<i64: 8, 128>}, {pipeline_mode = #tpu.pipeline_mode<synchronous>, transform_indices = @transform_3, window_bounds = array<i64: 384, 128>}, {transform_indices = @transform_4, window_bounds = array<i64: 1, 8, 128>}]} {
    %c0 = arith.constant 0 : index
    %c0_0 = arith.constant 0 : index
    %c0_1 = arith.constant 0 : index
    %0 = vector.load %arg1[%c0, %c0_0, %c0_1] : memref<1x8x128xbf16, #tpu.memory_space<vmem>>, vector<1x8x128xbf16>
    %1 = vector.shape_cast %0 : vector<1x8x128xbf16> to vector<8x128xbf16>
    %c0_2 = arith.constant 0 : index
    %c0_3 = arith.constant 0 : index
    %2 = vector.load %arg3[%c0_2, %c0_3] : memref<8x128xf32, #tpu.memory_space<vmem>>, vector<8x128xf32>
    %c0_4 = arith.constant 0 : index
    %c0_5 = arith.constant 0 : index
    %3 = vector.load %arg2[%c0_4, %c0_5] : memref<128x256xbf16, #tpu.memory_space<vmem>>, vector<128x256xbf16>
    %cst = arith.constant dense<0.000000e+00> : vector<8x256xf32>
    %4 = tpu.matmul %1, %3, %cst {dimension_numbers = #tpu.dot_dimension_numbers<[1], [0], [0], [1], [0, 0, 1, 1], [], []>} : vector<8x128xbf16>, vector<128x256xbf16>, vector<8x256xf32> -> vector<8x256xf32>
    %5 = vector.extract_strided_slice %4 {offsets = [0, 0], sizes = [8, 128], strides = [1, 1]} : vector<8x256xf32> to vector<8x128xf32>
    %6 = vector.extract_strided_slice %4 {offsets = [0, 128], sizes = [8, 128], strides = [1, 1]} : vector<8x256xf32> to vector<8x128xf32>
    %7 = vector.extract_strided_slice %2 {offsets = [4, 0], sizes = [1, 128], strides = [1, 1]} : vector<8x128xf32> to vector<1x128xf32>
    %8 = vector.broadcast %7 : vector<1x128xf32> to vector<8x128xf32>
    %9 = arith.mulf %6, %8 : vector<8x128xf32>
    %10 = vector.extract_strided_slice %2 {offsets = [5, 0], sizes = [1, 128], strides = [1, 1]} : vector<8x128xf32> to vector<1x128xf32>
    %11 = vector.broadcast %10 : vector<1x128xf32> to vector<8x128xf32>
    %12 = arith.addf %9, %11 : vector<8x128xf32>
    %13 = vector.extract_strided_slice %2 {offsets = [0, 0], sizes = [1, 128], strides = [1, 1]} : vector<8x128xf32> to vector<1x128xf32>
    %14 = vector.broadcast %13 : vector<1x128xf32> to vector<8x128xf32>
    %15 = arith.mulf %5, %14 : vector<8x128xf32>
    %16 = vector.extract_strided_slice %2 {offsets = [1, 0], sizes = [1, 128], strides = [1, 1]} : vector<8x128xf32> to vector<1x128xf32>
    %17 = vector.broadcast %16 : vector<1x128xf32> to vector<8x128xf32>
    %18 = arith.addf %15, %17 : vector<8x128xf32>
    %cst_6 = arith.constant 0.000000e+00 : f32
    %19 = vector.broadcast %cst_6 : f32 to vector<8x128xf32>
    %20 = arith.maximumf %18, %19 : vector<8x128xf32>
    %21 = arith.truncf %20 : vector<8x128xf32> to vector<8x128xbf16>
    %22 = vector.shape_cast %21 : vector<8x128xbf16> to vector<1x8x128xbf16>
    %cst_7 = arith.constant 0.000000e+00 : bf16
    %23 = vector.broadcast %cst_7 : bf16 to vector<1x1x128xbf16>
    %c0_8 = arith.constant 0 : index
    %c0_9 = arith.constant 0 : index
    %c0_10 = arith.constant 0 : index
    %24 = vector.load %arg6[%c0_8, %c0_9, %c0_10] : memref<1x10x128xbf16, #tpu.memory_space<vmem>>, vector<1x1x128xbf16>
    tpu.vector_store %arg6[%c0_8, %c0_9, %c0_10], %23 {strides = array<i32>} : memref<1x10x128xbf16, #tpu.memory_space<vmem>>, vector<1x1x128xbf16>,
    %c0_11 = arith.constant 0 : index
    %c9 = arith.constant 9 : index
    %c0_12 = arith.constant 0 : index
    %25 = vector.load %arg6[%c0_11, %c9, %c0_12] : memref<1x10x128xbf16, #tpu.memory_space<vmem>>, vector<1x1x128xbf16>
    tpu.vector_store %arg6[%c0_11, %c9, %c0_12], %23 {strides = array<i32>} : memref<1x10x128xbf16, #tpu.memory_space<vmem>>, vector<1x1x128xbf16>,
    %c0_13 = arith.constant 0 : index
    %c1 = arith.constant 1 : index
    %c0_14 = arith.constant 0 : index
    %26 = vector.load %arg6[%c0_13, %c1, %c0_14] : memref<1x10x128xbf16, #tpu.memory_space<vmem>>, vector<1x8x128xbf16>
    tpu.vector_store %arg6[%c0_13, %c1, %c0_14], %22 {strides = array<i32>} : memref<1x10x128xbf16, #tpu.memory_space<vmem>>, vector<1x8x128xbf16>,
    %c0_15 = arith.constant 0 : index
    %c0_16 = arith.constant 0 : index
    %c0_17 = arith.constant 0 : index
    %27 = vector.load %arg6[%c0_15, %c0_16, %c0_17] : memref<1x10x128xbf16, #tpu.memory_space<vmem>>, vector<1x8x128xbf16>
    %c0_18 = arith.constant 0 : index
    %c1_19 = arith.constant 1 : index
    %c0_20 = arith.constant 0 : index
    %28 = vector.load %arg6[%c0_18, %c1_19, %c0_20] : memref<1x10x128xbf16, #tpu.memory_space<vmem>>, vector<1x8x128xbf16>
    %c0_21 = arith.constant 0 : index
    %c2 = arith.constant 2 : index
    %c0_22 = arith.constant 0 : index
    %29 = vector.load %arg6[%c0_21, %c2, %c0_22] : memref<1x10x128xbf16, #tpu.memory_space<vmem>>, vector<1x8x128xbf16>
    %30 = tpu.concatenate %27, %28, %29 in 2 : vector<1x8x128xbf16>, vector<1x8x128xbf16>, vector<1x8x128xbf16> -> vector<1x8x384xbf16>
    %31 = vector.shape_cast %30 : vector<1x8x384xbf16> to vector<8x384xbf16>
    %c0_23 = arith.constant 0 : index
    %c0_24 = arith.constant 0 : index
    %32 = vector.load %arg4[%c0_23, %c0_24] : memref<384x128xbf16, #tpu.memory_space<vmem>>, vector<384x128xbf16>
    %cst_25 = arith.constant dense<0.000000e+00> : vector<8x128xf32>
    %33 = tpu.matmul %31, %32, %cst_25 {dimension_numbers = #tpu.dot_dimension_numbers<[1], [0], [0], [1], [0, 0, 1, 1], [], []>} : vector<8x384xbf16>, vector<384x128xbf16>, vector<8x128xf32> -> vector<8x128xf32>
    %34 = vector.extract_strided_slice %2 {offsets = [2, 0], sizes = [1, 128], strides = [1, 1]} : vector<8x128xf32> to vector<1x128xf32>
    %35 = vector.broadcast %34 : vector<1x128xf32> to vector<8x128xf32>
    %36 = arith.mulf %33, %35 : vector<8x128xf32>
    %37 = vector.extract_strided_slice %2 {offsets = [3, 0], sizes = [1, 128], strides = [1, 1]} : vector<8x128xf32> to vector<1x128xf32>
    %38 = vector.broadcast %37 : vector<1x128xf32> to vector<8x128xf32>
    %39 = arith.addf %36, %38 : vector<8x128xf32>
    %40 = arith.addf %39, %12 : vector<8x128xf32>
    %cst_26 = arith.constant 0.000000e+00 : f32
    %41 = vector.broadcast %cst_26 : f32 to vector<8x128xf32>
    %42 = arith.maximumf %40, %41 : vector<8x128xf32>
    %43 = vector.shape_cast %42 : vector<8x128xf32> to vector<1x8x128xf32>
    %c0_27 = arith.constant 0 : index
    %c0_28 = arith.constant 0 : index
    %c0_29 = arith.constant 0 : index
    %44 = vector.load %arg5[%c0_27, %c0_28, %c0_29] : memref<1x8x128xf32, #tpu.memory_space<vmem>>, vector<1x8x128xf32>
    tpu.vector_store %arg5[%c0_27, %c0_28, %c0_29], %43 {strides = array<i32>} : memref<1x8x128xf32, #tpu.memory_space<vmem>>, vector<1x8x128xf32>,
    return
  }
  func.func @transform_0(%arg0: i32) -> (i32, i32, i32) {
    %c0_i32 = arith.constant 0 : i32
    %c0_i32_0 = arith.constant 0 : i32
    %c0_i32_1 = arith.constant 0 : i32
    return %arg0, %c0_i32, %c0_i32_0 : i32, i32, i32
  }
  func.func @transform_1(%arg0: i32) -> (i32, i32) {
    %c0_i32 = arith.constant 0 : i32
    %c0_i32_0 = arith.constant 0 : i32
    %c0_i32_1 = arith.constant 0 : i32
    return %c0_i32, %c0_i32_0 : i32, i32
  }
  func.func @transform_2(%arg0: i32) -> (i32, i32) {
    %c0_i32 = arith.constant 0 : i32
    %c0_i32_0 = arith.constant 0 : i32
    %c0_i32_1 = arith.constant 0 : i32
    return %c0_i32, %c0_i32_0 : i32, i32
  }
  func.func @transform_3(%arg0: i32) -> (i32, i32) {
    %c0_i32 = arith.constant 0 : i32
    %c0_i32_0 = arith.constant 0 : i32
    %c0_i32_1 = arith.constant 0 : i32
    return %c0_i32, %c0_i32_0 : i32, i32
  }
  func.func @transform_4(%arg0: i32) -> (i32, i32, i32) {
    %c0_i32 = arith.constant 0 : i32
    %c0_i32_0 = arith.constant 0 : i32
    %c0_i32_1 = arith.constant 0 : i32
    return %arg0, %c0_i32, %c0_i32_0 : i32, i32, i32
  }
}

</mosaic_0001>

<llo_original>
// kernel: tpu_custom_call.1
$region0: #{tpu_custom_call.1}
  #allocation0 [shape = 'u32[]', space=smem, size = 0x4, offset = 0x4, fixed_abs, tag = 'smem constant byte address 0x4 - core index']
  #allocation1 [shape = 'u32[144,128]{1,0:T(1,128)}', space=vmem, size = 0x12000, scoped, tag = 'internal scratch']
  #allocation2 [shape = 'bf16[1,10,128]{2,1,0:T(8,128)(2,1)}', space=vmem, size = 0x1000, scoped, tag = 'scratch operand']
  %s0 = inlined_call_operand.hbm [shape: bf16[2,8,128], index: 0, kind: input, shape index: {}]
  %s1 = inlined_call_operand.hbm [shape: bf16[128,256], index: 1, kind: input, shape index: {}]
  %s2 = inlined_call_operand.hbm [shape: f32[8,128], index: 2, kind: input, shape index: {}]
  %s3 = inlined_call_operand.hbm [shape: bf16[384,128], index: 3, kind: input, shape index: {}]
  %s4 = inlined_call_operand.hbm [shape: f32[2,8,128], index: 4, kind: output, shape index: {}]
  %s5 = sld [smem:[#allocation0]]
  $region65: #{tpu_custom_call.1} parent=0
    _
  %s7 = ssub.s32 1, %s5
  %s8 = scalar_select 0, %s7, %s5
  $region1: #{tpu_custom_call.1} parent=0
    #allocation3 [shape = 'u8[4096]{0}', space=vmem, size = 0x1000, scoped, tag = 'input window, operand 0']
    #allocation4 [shape = 's32[2]{0}', space=sflag, size = 0x8, scoped, tag = 'scoped memory for tpu_custom_call.1']
    #allocation5 [shape = 's32[2]{0}', space=sflag, size = 0x8, scoped, tag = 'scoped memory for tpu_custom_call.1']
    #allocation6 [shape = 'u8[65536]{0}', space=vmem, size = 0x10000, scoped, tag = 'input window, operand 1, single buffered']
    #allocation7 [shape = 's32[1]{0}', space=sflag, size = 0x4, scoped, tag = 'scoped memory for tpu_custom_call.1']
    #allocation8 [shape = 'u8[4096]{0}', space=vmem, size = 0x1000, scoped, tag = 'input window, operand 2, single buffered']
    #allocation9 [shape = 'u8[98304]{0}', space=vmem, size = 0x18000, scoped, tag = 'input window, operand 3, single buffered']
    #allocation10 [shape = 's32[1]{0}', space=sflag, size = 0x4, scoped, tag = 'scoped memory for tpu_custom_call.1']
    #allocation11 [shape = 'u8[8192]{0}', space=vmem, size = 0x2000, scoped, tag = 'output window, operand 0']
    %9 = vsyncpa [#allocation4], 0
    %s10 = scalar_lea.sflag [#allocation4], 1
    %11 = vsyncpa %s10, 0
    %12 = vsyncpa [#allocation7], 0
    %13 = vsyncpa [#allocation10], 0
    %14 = vsyncpa [#allocation5], 0
    %s15 = scalar_lea.sflag [#allocation5], 1
    %16 = vsyncpa %s15, 0
    loop: start=0, step=1, limit=4
    $region2: #{tpu_custom_call.1} parent=1 // loop_pre_header
      _
    $region3: #{tpu_custom_call.1} parent=1 // loop_header
      %s18 = sphi 0, %s22
      %p19 = scmp.ge.s32.totalorder %s18, 4
      %s28 = sphi 0, %s30
      %s31 = sphi 0, %s28
      %s32 = sphi 0, %s31
      %s48 = sphi 0, %s32
      %s52 = sphi 0, %s52
      %s54 = sphi 0, %s52
      %s55 = sphi 0, %s54
      %s69 = sphi 0, %s55
      %s73 = sphi 0, %s73
      %s75 = sphi 0, %s73
      %s76 = sphi 0, %s75
      %s90 = sphi 0, %s76
      %s94 = sphi 0, %s94
      %s96 = sphi 0, %s94
      %s97 = sphi 0, %s96
      %s111 = sphi 0, %s97
      %s117 = sphi 0, %s119
      %s120 = sphi 0, %s117
      %s121 = sphi 0, %s120
      %s137 = sphi 0, %s121
    $region4: #{tpu_custom_call.1} parent=1 // loop_header_branch
      %21 = sbr.rel (%p19) target = $region8
    $region5: #{tpu_custom_call.1} parent=1 // loop_body
      %s23 = ssub.s32 %s18, 1
      %s24 = ssub.s32 %s18, 2
      %s25 = sadd.s32 %s18, 1
      %s26 = ssub.s32 %s18, %s25
      %p27 = scmp.eq.s32.totalorder %s26, 0
      %s29 = sadd.s32 %s28, 1
      %s30 = scalar_select %p27, %s28, %s29
      %p33 = pneg %p27
      %p34 = scmp.eq.s32.totalorder %s18, 1
      %p35 = por %p33, %p34
      %p36 = scmp.ne.s32.totalorder %s28, %s31
      %p37 = scmp.eq.s32.totalorder %s18, 0
      %p38 = por %p36, %p37
      %p39 = scmp.ne.s32.totalorder %s28, %s31
      %p40 = scmp.eq.s32.totalorder %s23, 1
      %p41 = por %p39, %p40
      %p42 = scmp.ne.s32.totalorder %s31, %s32
      %p43 = scmp.eq.s32.totalorder %s23, 0
      %p44 = por %p42, %p43
      %p45 = scmp.ne.s32.totalorder %s31, %s32
      %p46 = scmp.eq.s32.totalorder %s24, 1
      %p47 = por %p45, %p46
      %p49 = scmp.ne.s32.totalorder %s32, %s48
      %p50 = scmp.eq.s32.totalorder %s24, 0
      %p51 = por %p49, %p50
      %s53 = sadd.s32 %s52, 1
      %p56 = scmp.eq.s32.totalorder %s18, 1
      %p57 = scmp.ne.s32.totalorder %s52, %s54
      %p58 = scmp.eq.s32.totalorder %s18, 0
      %p59 = por %p57, %p58
      %p60 = scmp.ne.s32.totalorder %s52, %s54
      %p61 = scmp.eq.s32.totalorder %s23, 1
      %p62 = por %p60, %p61
      %p63 = scmp.ne.s32.totalorder %s54, %s55
      %p64 = scmp.eq.s32.totalorder %s23, 0
      %p65 = por %p63, %p64
      %p66 = scmp.ne.s32.totalorder %s54, %s55
      %p67 = scmp.eq.s32.totalorder %s24, 1
      %p68 = por %p66, %p67
      %p70 = scmp.ne.s32.totalorder %s55, %s69
      %p71 = scmp.eq.s32.totalorder %s24, 0
      %p72 = por %p70, %p71
      %s74 = sadd.s32 %s73, 1
      %p77 = scmp.eq.s32.totalorder %s18, 1
      %p78 = scmp.ne.s32.totalorder %s73, %s75
      %p79 = scmp.eq.s32.totalorder %s18, 0
      %p80 = por %p78, %p79
      %p81 = scmp.ne.s32.totalorder %s73, %s75
      %p82 = scmp.eq.s32.totalorder %s23, 1
      %p83 = por %p81, %p82
      %p84 = scmp.ne.s32.totalorder %s75, %s76
      %p85 = scmp.eq.s32.totalorder %s23, 0
      %p86 = por %p84, %p85
      %p87 = scmp.ne.s32.totalorder %s75, %s76
      %p88 = scmp.eq.s32.totalorder %s24, 1
      %p89 = por %p87, %p88
      %p91 = scmp.ne.s32.totalorder %s76, %s90
      %p92 = scmp.eq.s32.totalorder %s24, 0
      %p93 = por %p91, %p92
      %s95 = sadd.s32 %s94, 1
      %p98 = scmp.eq.s32.totalorder %s18, 1
      %p99 = scmp.ne.s32.totalorder %s94, %s96
      %p100 = scmp.eq.s32.totalorder %s18, 0
      %p101 = por %p99, %p100
      %p102 = scmp.ne.s32.totalorder %s94, %s96
      %p103 = scmp.eq.s32.totalorder %s23, 1
      %p104 = por %p102, %p103
      %p105 = scmp.ne.s32.totalorder %s96, %s97
      %p106 = scmp.eq.s32.totalorder %s23, 0
      %p107 = por %p105, %p106
      %p108 = scmp.ne.s32.totalorder %s96, %s97
      %p109 = scmp.eq.s32.totalorder %s24, 1
      %p110 = por %p108, %p109
      %p112 = scmp.ne.s32.totalorder %s97, %s111
      %p113 = scmp.eq.s32.totalorder %s24, 0
      %p114 = por %p112, %p113
      %s115 = ssub.s32 %s18, %s25
      %p116 = scmp.eq.s32.totalorder %s115, 0
      %s118 = sadd.s32 %s117, 1
      %s119 = scalar_select %p116, %s117, %s118
      %p122 = pneg %p116
      %p123 = scmp.eq.s32.totalorder %s18, 1
      %p124 = por %p122, %p123
      %p125 = scmp.ne.s32.totalorder %s117, %s120
      %p126 = scmp.eq.s32.totalorder %s18, 0
      %p127 = por %p125, %p126
      %p128 = scmp.ne.s32.totalorder %s117, %s120
      %p129 = scmp.eq.s32.totalorder %s23, 1
      %p130 = por %p128, %p129
      %p131 = scmp.ne.s32.totalorder %s120, %s121
      %p132 = scmp.eq.s32.totalorder %s23, 0
      %p133 = por %p131, %p132
      %p134 = scmp.ne.s32.totalorder %s120, %s121
      %p135 = scmp.eq.s32.totalorder %s24, 1
      %p136 = por %p134, %p135
      %p138 = scmp.ne.s32.totalorder %s121, %s137
      %p139 = scmp.eq.s32.totalorder %s24, 0
      %p140 = por %p138, %p139
      %p141 = scmp.le.s32.totalorder 1, %s18
      %p142 = scmp.lt.s32.totalorder %s18, 3
      %p143 = pnand %p141, %p142
      %p144 = pneg %p143
      // Predicated region
      $region9: #{tpu_custom_call.1} parent=5 // pred_check
        _
      $region10: #{tpu_custom_call.1} parent=5 // pred_check_branch
        %146 = sbr.rel (%p143) target = $region12
      $region11: #{tpu_custom_call.1} parent=5 // pred_region
        %s147 = ssub.s32 %s18, 1
        // Predicated region
        $region13: #{tpu_custom_call.1} parent=11 // pred_check
          %p148 = pneg %p65
        $region14: #{tpu_custom_call.1} parent=11 // pred_check_branch
          %150 = sbr.rel (%p148) target = $region16
        $region15: #{tpu_custom_call.1} parent=11 // pred_region
          %s152 = ssub.s32 2048, 2048
          %153 = vsyncadd [#allocation7], %s152
          %s154 = sshll.u32 [#allocation6], 4
          %s155 = int_to_ptr.vmem [resolvable:$true] %s154
          %160 = dma.hbm_to_vmem [thread:$0]  %s1, 2048, %s155, [#allocation7], 128, 128, 8
        $region16: #{tpu_custom_call.1} parent=11 // pred_fallthru
          _
        // Predicated region
        $region17: #{tpu_custom_call.1} parent=11 // pred_check
          %p161 = pneg %p86
        $region18: #{tpu_custom_call.1} parent=11 // pred_check_branch
          %163 = sbr.rel (%p161) target = $region20
        $region19: #{tpu_custom_call.1} parent=11 // pred_region
          %s165 = ssub.s32 128, 128
          %166 = vsyncadd [#allocation7], %s165
          %s168 = sshll.u32 [#allocation8], 4
          %s169 = int_to_ptr.vmem [resolvable:$true] %s168
          %171 = dma.hbm_to_vmem [thread:$0]  %s2, 128, %s169, [#allocation7]
        $region20: #{tpu_custom_call.1} parent=11 // pred_fallthru
          _
        // Predicated region
        $region21: #{tpu_custom_call.1} parent=11 // pred_check
          %p172 = pneg %p107
        $region22: #{tpu_custom_call.1} parent=11 // pred_check_branch
          %174 = sbr.rel (%p172) target = $region24
        $region23: #{tpu_custom_call.1} parent=11 // pred_region
          %s176 = ssub.s32 3072, 3072
          %177 = vsyncadd [#allocation10], %s176
          %s178 = sshll.u32 [#allocation9], 4
          %s179 = int_to_ptr.vmem [resolvable:$true] %s178
          %184 = dma.hbm_to_vmem [thread:$0]  %s3, 3072, %s179, [#allocation10], 64, 64, 4
        $region24: #{tpu_custom_call.1} parent=11 // pred_fallthru
          _
      $region12: #{tpu_custom_call.1} parent=5 // pred_fallthru
        _
      %p185 = scmp.lt.s32.totalorder %s18, 2
      // Predicated region
      $region25: #{tpu_custom_call.1} parent=5 // pred_check
        %p186 = pneg %p185
      $region26: #{tpu_custom_call.1} parent=5 // pred_check_branch
        %188 = sbr.rel (%p186) target = $region28
      $region27: #{tpu_custom_call.1} parent=5 // pred_region
        // Predicated region
        $region29: #{tpu_custom_call.1} parent=27 // pred_check
          %p189 = pneg %p38
        $region30: #{tpu_custom_call.1} parent=27 // pred_check_branch
          %191 = sbr.rel (%p189) target = $region32
        $region31: #{tpu_custom_call.1} parent=27 // pred_region
          %s192 = sand.u32 %s28, 1
          %s193 = scalar_lea.sflag [#allocation4], %s192
          %s194 = sand.u32 %s28, 1
          %s195 = smul.addr %s194, 4
          %s196 = scalar_lea.vmem [#allocation3], %s195
          %s198 = ssub.s32 64, 64
          %199 = vsyncadd %s193, %s198
          %s200 = smul.addr %s18, 64
          %s201 = scalar_lea.hbm %s0, %s200
          %s203 = sshll.u32 %s196, 4
          %s204 = int_to_ptr.vmem [resolvable:$true] %s203
          %206 = dma.hbm_to_vmem [thread:$0]  %s201, 64, %s204, %s193
        $region32: #{tpu_custom_call.1} parent=27 // pred_fallthru
          _
      $region28: #{tpu_custom_call.1} parent=5 // pred_fallthru
        _
      %p207 = scmp.le.s32.totalorder 1, %s18
      %p208 = scmp.lt.s32.totalorder %s18, 3
      %p209 = pnand %p207, %p208
      %p210 = pneg %p209
      // Predicated region
      $region33: #{tpu_custom_call.1} parent=5 // pred_check
        _
      $region34: #{tpu_custom_call.1} parent=5 // pred_check_branch
        %212 = sbr.rel (%p209) target = $region36
      $region35: #{tpu_custom_call.1} parent=5 // pred_region
        %s213 = ssub.s32 %s18, 1
        %s214 = sand.u32 %s31, 1
        %s215 = scalar_lea.sflag [#allocation4], %s214
        %s216 = sand.u32 %s31, 1
        %s217 = smul.addr %s216, 4
        %s218 = scalar_lea.vmem [#allocation3], %s217
        // Predicated region
        $region37: #{tpu_custom_call.1} parent=35 // pred_check
          %p219 = pneg %p44
        $region38: #{tpu_custom_call.1} parent=35 // pred_check_branch
          %221 = sbr.rel (%p219) target = $region40
        $region39: #{tpu_custom_call.1} parent=35 // pred_region
          %222 = dma.done %s215, 64
        $region40: #{tpu_custom_call.1} parent=35 // pred_fallthru
          _
        // Predicated region
        $region41: #{tpu_custom_call.1} parent=35 // pred_check
          %p223 = pneg %p65
        $region42: #{tpu_custom_call.1} parent=35 // pred_check_branch
          %225 = sbr.rel (%p223) target = $region44
        $region43: #{tpu_custom_call.1} parent=35 // pred_region
          %226 = dma.done [#allocation7], 2048
        $region44: #{tpu_custom_call.1} parent=35 // pred_fallthru
          _
        // Predicated region
        $region45: #{tpu_custom_call.1} parent=35 // pred_check
          %p227 = pneg %p86
        $region46: #{tpu_custom_call.1} parent=35 // pred_check_branch
          %229 = sbr.rel (%p227) target = $region48
        $region47: #{tpu_custom_call.1} parent=35 // pred_region
          %230 = dma.done [#allocation7], 128
        $region48: #{tpu_custom_call.1} parent=35 // pred_fallthru
          _
        // Predicated region
        $region49: #{tpu_custom_call.1} parent=35 // pred_check
          %p231 = pneg %p107
        $region50: #{tpu_custom_call.1} parent=35 // pred_check_branch
          %233 = sbr.rel (%p231) target = $region52
        $region51: #{tpu_custom_call.1} parent=35 // pred_region
          %234 = dma.done [#allocation10], 3072
        $region52: #{tpu_custom_call.1} parent=35 // pred_fallthru
          _
        %s235 = sand.u32 %s31, 1
        %s236 = scalar_lea.sflag [#allocation4], %s235
        %s237 = sand.u32 %s31, 1
        %s238 = smul.addr %s237, 4
        %s239 = scalar_lea.vmem [#allocation3], %s238
        %p240 = pneg %p44
        %p241 = pneg %p41
        %p242 = pneg %p65
        %p243 = pneg %p62
        %p244 = pneg %p86
        %p245 = pneg %p83
        %p246 = pneg %p107
        %p247 = pneg %p104
        %p248 = pneg %p133
        %p249 = pneg %p130
        %s250 = sand.u32 %s120, 1
        %s251 = scalar_lea.sflag [#allocation5], %s250
        %s252 = sand.u32 %s120, 1
        %s253 = smul.addr %s252, 8
        %s254 = scalar_lea.vmem [#allocation11], %s253
        %v256 = vld [vmem:[%s218] sm:$0xf]
        %v257 = vld [vmem:[#allocation8] sm:$0xff]
        %v258 = vld [vmem:[#allocation6] sm:$0xff]
        %v259 = vld [vmem:[#allocation6 + $0x8] sm:$0xff]
        %v260 = vld [vmem:[#allocation6 + $0x10] sm:$0xff]
        %v261 = vld [vmem:[#allocation6 + $0x18] sm:$0xff]
        %v262 = vld [vmem:[#allocation6 + $0x20] sm:$0xff]
        %v263 = vld [vmem:[#allocation6 + $0x28] sm:$0xff]
        %v264 = vld [vmem:[#allocation6 + $0x30] sm:$0xff]
        %v265 = vld [vmem:[#allocation6 + $0x38] sm:$0xff]
        %v266 = vld [vmem:[#allocation6 + $0x40] sm:$0xff]
        %v267 = vld [vmem:[#allocation6 + $0x48] sm:$0xff]
        %v268 = vld [vmem:[#allocation6 + $0x50] sm:$0xff]
        %v269 = vld [vmem:[#allocation6 + $0x58] sm:$0xff]
        %v270 = vld [vmem:[#allocation6 + $0x60] sm:$0xff]
        %v271 = vld [vmem:[#allocation6 + $0x68] sm:$0xff]
        %v272 = vld [vmem:[#allocation6 + $0x70] sm:$0xff]
        %v273 = vld [vmem:[#allocation6 + $0x78] sm:$0xff]
        %v290 = vunpack.c.l.b16 %v258
        %v291 = vunpack.c.h.b16 %v258
        %v292 = vunpack.c.l.b16 %v259
        %v293 = vunpack.c.h.b16 %v259
        %v294 = vunpack.c.l.b16 %v260
        %v295 = vunpack.c.h.b16 %v260
        %v296 = vunpack.c.l.b16 %v261
        %v297 = vunpack.c.h.b16 %v261
        %v298 = vunpack.c.l.b16 %v262
        %v299 = vunpack.c.h.b16 %v262
        %v300 = vunpack.c.l.b16 %v263
        %v301 = vunpack.c.h.b16 %v263
        %v302 = vunpack.c.l.b16 %v264
        %v303 = vunpack.c.h.b16 %v264
        %v304 = vunpack.c.l.b16 %v265
        %v305 = vunpack.c.h.b16 %v265
        %v306 = vunpack.c.l.b16 %v266
        %v307 = vunpack.c.h.b16 %v266
        %v308 = vunpack.c.l.b16 %v267
        %v309 = vunpack.c.h.b16 %v267
        %v310 = vunpack.c.l.b16 %v268
        %v311 = vunpack.c.h.b16 %v268
        %v312 = vunpack.c.l.b16 %v269
        %v313 = vunpack.c.h.b16 %v269
        %v314 = vunpack.c.l.b16 %v270
        %v315 = vunpack.c.h.b16 %v270
        %v316 = vunpack.c.l.b16 %v271
        %v317 = vunpack.c.h.b16 %v271
        %v318 = vunpack.c.l.b16 %v272
        %v319 = vunpack.c.h.b16 %v272
        %v320 = vunpack.c.l.b16 %v273
        %v321 = vunpack.c.h.b16 %v273
        %v322 = vpack.c.b16 %v292, %v290
        %v323 = vpack.c.b16 %v293, %v291
        %v324 = vpack.c.b16 %v296, %v294
        %v325 = vpack.c.b16 %v297, %v295
        %v326 = vpack.c.b16 %v300, %v298
        %v327 = vpack.c.b16 %v301, %v299
        %v328 = vpack.c.b16 %v304, %v302
        %v329 = vpack.c.b16 %v305, %v303
        %v330 = vpack.c.b16 %v308, %v306
        %v331 = vpack.c.b16 %v309, %v307
        %v332 = vpack.c.b16 %v312, %v310
        %v333 = vpack.c.b16 %v313, %v311
        %v334 = vpack.c.b16 %v316, %v314
        %v335 = vpack.c.b16 %v317, %v315
        %v336 = vpack.c.b16 %v320, %v318
        %v337 = vpack.c.b16 %v321, %v319
        %354 = vmatprep.subr.bf16.mxu0 %v323
        %355 = vmatpush1.bf16.msra.mxu0 %v322
        %356 = vmatprep.subr.bf16.mxu0 %v325
        %357 = vmatpush1.bf16.msra.mxu0 %v324
        %358 = vmatprep.subr.bf16.mxu0 %v327
        %359 = vmatpush1.bf16.msra.mxu0 %v326
        %360 = vmatprep.subr.bf16.mxu0 %v329
        %361 = vmatpush1.bf16.msra.mxu0 %v328
        %362 = vmatprep.subr.bf16.mxu0 %v331
        %363 = vmatpush1.bf16.msra.mxu0 %v330
        %364 = vmatprep.subr.bf16.mxu0 %v333
        %365 = vmatpush1.bf16.msra.mxu0 %v332
        %366 = vmatprep.subr.bf16.mxu0 %v335
        %367 = vmatpush1.bf16.msra.mxu0 %v334
        %368 = vmatprep.subr.bf16.mxu0 %v337
        %369 = vmatpush1.bf16.msra.mxu0 %v336
        %370 = vmatprep.subr.bf16.mxu0 0
        %371 = vmatpush1.bf16.msra.mxu0 0
        %372 = vmatprep.subr.bf16.mxu0 0
        %373 = vmatpush1.bf16.msra.mxu0 0
        %374 = vmatprep.subr.bf16.mxu0 0
        %375 = vmatpush1.bf16.msra.mxu0 0
        %376 = vmatprep.subr.bf16.mxu0 0
        %377 = vmatpush1.bf16.msra.mxu0 0
        %378 = vmatprep.subr.bf16.mxu0 0
        %379 = vmatpush1.bf16.msra.mxu0 0
        %380 = vmatprep.subr.bf16.mxu0 0
        %381 = vmatpush1.bf16.msra.mxu0 0
        %382 = vmatprep.subr.bf16.mxu0 0
        %383 = vmatpush1.bf16.msra.mxu0 0
        %384 = vmatprep.subr.bf16.mxu0 0
        %385 = vmatpush1.bf16.msra.mxu0 0
        %386 = vmatprep.mubr.bf16.mxu0 0
        %387 = vmatmul.mubr.bf16.gmra.mrb[0].mxu0 %v256
        %v388 = vpop.f32.mrb[0].mxu0
        %v389 = vadd.f32 0.0, %v388
        %v390 = vpop.f32.mrb[0].mxu0
        %v391 = vadd.f32 0.0, %v390
        %v392 = vpop.f32.mrb[0].mxu0
        %v393 = vpop.f32.mrb[0].mxu0
        %394 = vdwg.mxu0
        %v395 = vlaneseq
        %v396 = vshrl.u32 %v395, 7
        %v397 = vsub.s32 4, %v396
        %v398 = vrot.slane %v257, %v397
        %v399 = vmul.f32 %v391, %v398
        %v400 = vlaneseq
        %v401 = vshrl.u32 %v400, 7
        %v402 = vsub.s32 5, %v401
        %v403 = vrot.slane %v257, %v402
        %v404 = vadd.f32 %v399, %v403
        %v405 = vlaneseq
        %v406 = vshrl.u32 %v405, 7
        %v407 = vsub.s32 0, %v406
        %v408 = vrot.slane %v257, %v407
        %v409 = vmul.f32 %v389, %v408
        %v410 = vlaneseq
        %v411 = vshrl.u32 %v410, 7
        %v412 = vsub.s32 1, %v411
        %v413 = vrot.slane %v257, %v412
        %v414 = vadd.f32 %v409, %v413
        %v415 = vmax.f32 %v414, 0.0
        %v416 = vpack.c.bf16 %v415, %v415
        %vm417 = vcmask 1040384
        %vm418 = vsmask.f32 256
        %vm419 = vmand %vm417, %vm418
        %v420 = vld [vmem:[#allocation2] sm:$0x1]
        %v421 = vsel %vm419, 0, %v420
        %422 = vst [vmem:[#allocation2] sm:$0x1] %v421
        %vm423 = vsmask.f32 7938
        %vm424 = vmand %vm417, %vm423
        %v425 = vld [vmem:[#allocation2 + $0x4] sm:$0x1]
        %v426 = vsel %vm424, 0, %v425
        %427 = vst [vmem:[#allocation2 + $0x4] sm:$0x1] %v426
        %v429 = vunpack.c.l.b16 %v416
        %v430 = vpack.c.b16 %v429, %v429
        %v432 = vshrl.u32 %v430, 16
        %v434 = vrot.slane %v432, 7
        %v435 = vshll.u32 %v430, 16
        %v437 = vor.u32 %v434, %v435
        %v438 = vrot.slane %v434, 4
        %vm441 = vcmask 1043456
        %vm442 = vmand %vm441, %vm423
        %v443 = vld [vmem:[#allocation2] sm:$0xf]
        %v444 = vsel %vm442, %v437, %v443
        %445 = vst [vmem:[#allocation2] sm:$0xf] %v444
        %v446 = vld [vmem:[#allocation2 + $0x4] sm:$0x1]
        %v447 = vsel %vm419, %v438, %v446
        %448 = vst [vmem:[#allocation2 + $0x4] sm:$0x1] %v447
        %v449 = vld [vmem:[#allocation2] sm:$0xf]
        %v450 = vld [vmem:[#allocation2 + $0x4] sm:$0x1]
        %v451 = vld [vmem:[#allocation2] sm:$0xe]
        %v454 = vunpack.c.l.b16 %v449
        %v455 = vunpack.c.l.b16 %v450
        %v456 = vpack.c.b16 %v455, %v454
        %v458 = vshrl.u32 %v456, 16
        %v460 = vshll.u32 %v456, 16
        %v462 = vrot.slane %v460, 1
        %v463 = vor.u32 %v458, %v462
        %v466 = vunpack.c.l.b16 %v451
        %v467 = vpack.c.b16 %v455, %v466
        %v468 = vrot.slane %v467, 1
        %v470 = vld [vmem:[#allocation9] sm:$0xf]
        %v471 = vld [vmem:[#allocation9 + $0x4] sm:$0xf]
        %v472 = vld [vmem:[#allocation9 + $0x8] sm:$0xf]
        %v473 = vld [vmem:[#allocation9 + $0xc] sm:$0xf]
        %v474 = vld [vmem:[#allocation9 + $0x10] sm:$0xf]
        %v475 = vld [vmem:[#allocation9 + $0x14] sm:$0xf]
        %v476 = vld [vmem:[#allocation9 + $0x18] sm:$0xf]
        %v477 = vld [vmem:[#allocation9 + $0x1c] sm:$0xf]
        %v478 = vld [vmem:[#allocation9 + $0x20] sm:$0xf]
        %v479 = vld [vmem:[#allocation9 + $0x24] sm:$0xf]
        %v480 = vld [vmem:[#allocation9 + $0x28] sm:$0xf]
        %v481 = vld [vmem:[#allocation9 + $0x2c] sm:$0xf]
        %v482 = vld [vmem:[#allocation9 + $0x30] sm:$0xf]
        %v483 = vld [vmem:[#allocation9 + $0x34] sm:$0xf]
        %v484 = vld [vmem:[#allocation9 + $0x38] sm:$0xf]
        %v485 = vld [vmem:[#allocation9 + $0x3c] sm:$0xf]
        %v486 = vld [vmem:[#allocation9 + $0x40] sm:$0xf]
        %v487 = vld [vmem:[#allocation9 + $0x44] sm:$0xf]
        %v488 = vld [vmem:[#allocation9 + $0x48] sm:$0xf]
        %v489 = vld [vmem:[#allocation9 + $0x4c] sm:$0xf]
        %v490 = vld [vmem:[#allocation9 + $0x50] sm:$0xf]
        %v491 = vld [vmem:[#allocation9 + $0x54] sm:$0xf]
        %v492 = vld [vmem:[#allocation9 + $0x58] sm:$0xf]
        %v493 = vld [vmem:[#allocation9 + $0x5c] sm:$0xf]
        %v494 = vld [vmem:[#allocation9 + $0x60] sm:$0xf]
        %v495 = vld [vmem:[#allocation9 + $0x64] sm:$0xf]
        %v496 = vld [vmem:[#allocation9 + $0x68] sm:$0xf]
        %v497 = vld [vmem:[#allocation9 + $0x6c] sm:$0xf]
        %v498 = vld [vmem:[#allocation9 + $0x70] sm:$0xf]
        %v499 = vld [vmem:[#allocation9 + $0x74] sm:$0xf]
        %v500 = vld [vmem:[#allocation9 + $0x78] sm:$0xf]
        %v501 = vld [vmem:[#allocation9 + $0x7c] sm:$0xf]
        %v502 = vld [vmem:[#allocation9 + $0x80] sm:$0xf]
        %v503 = vld [vmem:[#allocation9 + $0x84] sm:$0xf]
        %v504 = vld [vmem:[#allocation9 + $0x88] sm:$0xf]
        %v505 = vld [vmem:[#allocation9 + $0x8c] sm:$0xf]
        %v506 = vld [vmem:[#allocation9 + $0x90] sm:$0xf]
        %v507 = vld [vmem:[#allocation9 + $0x94] sm:$0xf]
        %v508 = vld [vmem:[#allocation9 + $0x98] sm:$0xf]
        %v509 = vld [vmem:[#allocation9 + $0x9c] sm:$0xf]
        %v510 = vld [vmem:[#allocation9 + $0xa0] sm:$0xf]
        %v511 = vld [vmem:[#allocation9 + $0xa4] sm:$0xf]
        %v512 = vld [vmem:[#allocation9 + $0xa8] sm:$0xf]
        %v513 = vld [vmem:[#allocation9 + $0xac] sm:$0xf]
        %v514 = vld [vmem:[#allocation9 + $0xb0] sm:$0xf]
        %v515 = vld [vmem:[#allocation9 + $0xb4] sm:$0xf]
        %v516 = vld [vmem:[#allocation9 + $0xb8] sm:$0xf]
        %v517 = vld [vmem:[#allocation9 + $0xbc] sm:$0xf]
        %v566 = vunpack.c.l.b16 %v470
        %v567 = vunpack.c.l.b16 %v471
        %v568 = vunpack.c.l.b16 %v472
        %v569 = vunpack.c.l.b16 %v473
        %v570 = vunpack.c.l.b16 %v474
        %v571 = vunpack.c.l.b16 %v475
        %v572 = vunpack.c.l.b16 %v476
        %v573 = vunpack.c.l.b16 %v477
        %v574 = vunpack.c.l.b16 %v478
        %v575 = vunpack.c.l.b16 %v479
        %v576 = vunpack.c.l.b16 %v480
        %v577 = vunpack.c.l.b16 %v481
        %v578 = vunpack.c.l.b16 %v482
        %v579 = vunpack.c.l.b16 %v483
        %v580 = vunpack.c.l.b16 %v484
        %v581 = vunpack.c.l.b16 %v485
        %v582 = vunpack.c.l.b16 %v486
        %v583 = vunpack.c.l.b16 %v487
        %v584 = vunpack.c.l.b16 %v488
        %v585 = vunpack.c.l.b16 %v489
        %v586 = vunpack.c.l.b16 %v490
        %v587 = vunpack.c.l.b16 %v491
        %v588 = vunpack.c.l.b16 %v492
        %v589 = vunpack.c.l.b16 %v493
        %v590 = vunpack.c.l.b16 %v494
        %v591 = vunpack.c.l.b16 %v495
        %v592 = vunpack.c.l.b16 %v496
        %v593 = vunpack.c.l.b16 %v497
        %v594 = vunpack.c.l.b16 %v498
        %v595 = vunpack.c.l.b16 %v499
        %v596 = vunpack.c.l.b16 %v500
        %v597 = vunpack.c.l.b16 %v501
        %v598 = vunpack.c.l.b16 %v502
        %v599 = vunpack.c.l.b16 %v503
        %v600 = vunpack.c.l.b16 %v504
        %v601 = vunpack.c.l.b16 %v505
        %v602 = vunpack.c.l.b16 %v506
        %v603 = vunpack.c.l.b16 %v507
        %v604 = vunpack.c.l.b16 %v508
        %v605 = vunpack.c.l.b16 %v509
        %v606 = vunpack.c.l.b16 %v510
        %v607 = vunpack.c.l.b16 %v511
        %v608 = vunpack.c.l.b16 %v512
        %v609 = vunpack.c.l.b16 %v513
        %v610 = vunpack.c.l.b16 %v514
        %v611 = vunpack.c.l.b16 %v515
        %v612 = vunpack.c.l.b16 %v516
        %v613 = vunpack.c.l.b16 %v517
        %v614 = vpack.c.b16 %v567, %v566
        %v615 = vpack.c.b16 %v569, %v568
        %v616 = vpack.c.b16 %v571, %v570
        %v617 = vpack.c.b16 %v573, %v572
        %v618 = vpack.c.b16 %v575, %v574
        %v619 = vpack.c.b16 %v577, %v576
        %v620 = vpack.c.b16 %v579, %v578
        %v621 = vpack.c.b16 %v581, %v580
        %v622 = vpack.c.b16 %v583, %v582
        %v623 = vpack.c.b16 %v585, %v584
        %v624 = vpack.c.b16 %v587, %v586
        %v625 = vpack.c.b16 %v589, %v588
        %v626 = vpack.c.b16 %v591, %v590
        %v627 = vpack.c.b16 %v593, %v592
        %v628 = vpack.c.b16 %v595, %v594
        %v629 = vpack.c.b16 %v597, %v596
        %v630 = vpack.c.b16 %v599, %v598
        %v631 = vpack.c.b16 %v601, %v600
        %v632 = vpack.c.b16 %v603, %v602
        %v633 = vpack.c.b16 %v605, %v604
        %v634 = vpack.c.b16 %v607, %v606
        %v635 = vpack.c.b16 %v609, %v608
        %v636 = vpack.c.b16 %v611, %v610
        %v637 = vpack.c.b16 %v613, %v612
        %662 = vmatprep.subr.bf16.mxu0 0
        %663 = vmatpush1.bf16.msra.mxu0 %v614
        %664 = vmatprep.subr.bf16.mxu0 0
        %665 = vmatpush1.bf16.msra.mxu0 %v615
        %666 = vmatprep.subr.bf16.mxu0 0
        %667 = vmatpush1.bf16.msra.mxu0 %v616
        %668 = vmatprep.subr.bf16.mxu0 0
        %669 = vmatpush1.bf16.msra.mxu0 %v617
        %670 = vmatprep.subr.bf16.mxu0 0
        %671 = vmatpush1.bf16.msra.mxu0 %v618
        %672 = vmatprep.subr.bf16.mxu0 0
        %673 = vmatpush1.bf16.msra.mxu0 %v619
        %674 = vmatprep.subr.bf16.mxu0 0
        %675 = vmatpush1.bf16.msra.mxu0 %v620
        %676 = vmatprep.subr.bf16.mxu0 0
        %677 = vmatpush1.bf16.msra.mxu0 %v621
        %678 = vmatprep.subr.bf16.mxu0 0
        %679 = vmatpush1.bf16.msra.mxu0 %v622
        %680 = vmatprep.subr.bf16.mxu0 0
        %681 = vmatpush1.bf16.msra.mxu0 %v623
        %682 = vmatprep.subr.bf16.mxu0 0
        %683 = vmatpush1.bf16.msra.mxu0 %v624
        %684 = vmatprep.subr.bf16.mxu0 0
        %685 = vmatpush1.bf16.msra.mxu0 %v625
        %686 = vmatprep.subr.bf16.mxu0 0
        %687 = vmatpush1.bf16.msra.mxu0 %v626
        %688 = vmatprep.subr.bf16.mxu0 0
        %689 = vmatpush1.bf16.msra.mxu0 %v627
        %690 = vmatprep.subr.bf16.mxu0 0
        %691 = vmatpush1.bf16.msra.mxu0 %v628
        %692 = vmatprep.subr.bf16.mxu0 0
        %693 = vmatpush1.bf16.msra.mxu0 %v629
        %694 = vmatprep.mubr.bf16.mxu0 %v463
        %695 = vmatmul.mubr.bf16.gmra.mrb[0].mxu0 %v449
        %v696 = vpop.f32.mrb[0].mxu0
        %v697 = vadd.f32 0.0, %v696
        %v698 = vpop.f32.mrb[0].mxu0
        %v699 = vpop.f32.mrb[0].mxu0
        %v700 = vpop.f32.mrb[0].mxu0
        %701 = vdwg.mxu0
        %702 = vmatprep.subr.bf16.mxu0 0
        %703 = vmatpush1.bf16.msra.mxu0 %v630
        %704 = vmatprep.subr.bf16.mxu0 0
        %705 = vmatpush1.bf16.msra.mxu0 %v631
        %706 = vmatprep.subr.bf16.mxu0 0
        %707 = vmatpush1.bf16.msra.mxu0 %v632
        %708 = vmatprep.subr.bf16.mxu0 0
        %709 = vmatpush1.bf16.msra.mxu0 %v633
        %710 = vmatprep.subr.bf16.mxu0 0
        %711 = vmatpush1.bf16.msra.mxu0 %v634
        %712 = vmatprep.subr.bf16.mxu0 0
        %713 = vmatpush1.bf16.msra.mxu0 %v635
        %714 = vmatprep.subr.bf16.mxu0 0
        %715 = vmatpush1.bf16.msra.mxu0 %v636
        %716 = vmatprep.subr.bf16.mxu0 0
        %717 = vmatpush1.bf16.msra.mxu0 %v637
        %718 = vmatprep.subr.bf16.mxu0 0
        %719 = vmatpush1.bf16.msra.mxu0 0
        %720 = vmatprep.subr.bf16.mxu0 0
        %721 = vmatpush1.bf16.msra.mxu0 0
        %722 = vmatprep.subr.bf16.mxu0 0
        %723 = vmatpush1.bf16.msra.mxu0 0
        %724 = vmatprep.subr.bf16.mxu0 0
        %725 = vmatpush1.bf16.msra.mxu0 0
        %726 = vmatprep.subr.bf16.mxu0 0
        %727 = vmatpush1.bf16.msra.mxu0 0
        %728 = vmatprep.subr.bf16.mxu0 0
        %729 = vmatpush1.bf16.msra.mxu0 0
        %730 = vmatprep.subr.bf16.mxu0 0
        %731 = vmatpush1.bf16.msra.mxu0 0
        %732 = vmatprep.subr.bf16.mxu0 0
        %733 = vmatpush1.bf16.msra.mxu0 0
        %734 = vmatprep.mubr.bf16.mxu0 0
        %735 = vmatmul.mubr.bf16.gmra.mrb[0].mxu0 %v468
        %v736 = vpop.f32.mrb[0].mxu0
        %v737 = vadd.f32 %v697, %v736
        %v738 = vpop.f32.mrb[0].mxu0
        %v739 = vpop.f32.mrb[0].mxu0
        %v740 = vpop.f32.mrb[0].mxu0
        %741 = vdwg.mxu0
        %v742 = vlaneseq
        %v743 = vshrl.u32 %v742, 7
        %v744 = vsub.s32 2, %v743
        %v745 = vrot.slane %v257, %v744
        %v746 = vmul.f32 %v737, %v745
        %v747 = vlaneseq
        %v748 = vshrl.u32 %v747, 7
        %v749 = vsub.s32 3, %v748
        %v750 = vrot.slane %v257, %v749
        %v751 = vadd.f32 %v746, %v750
        %v752 = vadd.f32 %v751, %v404
        %v753 = vmax.f32 %v752, 0.0
        %754 = vst [vmem:[%s254] sm:$0xff] %v753
        %s755 = sand.u32 %s120, 1
        %s756 = scalar_lea.sflag [#allocation5], %s755
        %s757 = sand.u32 %s120, 1
        %s758 = smul.addr %s757, 8
        %s759 = scalar_lea.vmem [#allocation11], %s758
        // Predicated region
        $region53: #{tpu_custom_call.1} parent=35 // pred_check
          %p760 = pneg %p130
        $region54: #{tpu_custom_call.1} parent=35 // pred_check_branch
          %762 = sbr.rel (%p760) target = $region56
        $region55: #{tpu_custom_call.1} parent=35 // pred_region
          %s764 = ssub.s32 128, 128
          %765 = vsyncadd %s756, %s764
          %s766 = smul.addr %s23, 128
          %s767 = scalar_lea.hbm %s4, %s766
          %s769 = sshll.u32 %s759, 4
          %s770 = int_to_ptr.vmem [resolvable:$true] %s769
          %772 = dma.vmem_to_hbm [thread:$0]  %s770, 128, %s767, %s756
        $region56: #{tpu_custom_call.1} parent=35 // pred_fallthru
          _
      $region36: #{tpu_custom_call.1} parent=5 // pred_fallthru
        _
      %p773 = scmp.le.s32.totalorder 2, %s18
      // Predicated region
      $region57: #{tpu_custom_call.1} parent=5 // pred_check
        %p774 = pneg %p773
      $region58: #{tpu_custom_call.1} parent=5 // pred_check_branch
        %776 = sbr.rel (%p774) target = $region60
      $region59: #{tpu_custom_call.1} parent=5 // pred_region
        %s777 = ssub.s32 %s18, 2
        // Predicated region
        $region61: #{tpu_custom_call.1} parent=59 // pred_check
          %p778 = pneg %p136
        $region62: #{tpu_custom_call.1} parent=59 // pred_check_branch
          %780 = sbr.rel (%p778) target = $region64
        $region63: #{tpu_custom_call.1} parent=59 // pred_region
          %s781 = sand.u32 %s121, 1
          %s782 = scalar_lea.sflag [#allocation5], %s781
          %s783 = sand.u32 %s121, 1
          %s784 = smul.addr %s783, 8
          %s785 = scalar_lea.vmem [#allocation11], %s784
          %786 = dma.done %s782, 128
        $region64: #{tpu_custom_call.1} parent=59 // pred_fallthru
          _
      $region60: #{tpu_custom_call.1} parent=5 // pred_fallthru
        _
    $region6: #{tpu_custom_call.1} parent=1 // loop_footer
      %s22 = sadd.s32 1, %s18
    $region7: #{tpu_custom_call.1} parent=1 // loop_footer_branch
      %17 = sbr.rel target = $region3
    $region8: #{tpu_custom_call.1} parent=1 // loop_exit
      _
    %787 = vsyncpa [#allocation4], 1
    %s788 = scalar_lea.sflag [#allocation4], 1
    %789 = vsyncpa %s788, 1
    %790 = vsyncpa [#allocation7], 1
    %791 = vsyncpa [#allocation10], 1
    %792 = vsyncpa [#allocation5], 1
    %s793 = scalar_lea.sflag [#allocation5], 1
    %794 = vsyncpa %s793, 1

// kernel: tpu_custom_call.1
$region0: #{tpu_custom_call.1}
  #allocation0 [shape = 'u32[]', space=smem, size = 0x4, offset = 0x4, fixed_abs, tag = 'smem constant byte address 0x4 - core index']
  #allocation1 [shape = 'u32[144,128]{1,0:T(1,128)}', space=vmem, size = 0x12000, scoped, tag = 'internal scratch']
  #allocation2 [shape = 'bf16[1,10,128]{2,1,0:T(8,128)(2,1)}', space=vmem, size = 0x1000, scoped, tag = 'scratch operand']
  %s0 = inlined_call_operand.hbm [shape: bf16[2,8,128], index: 0, kind: input, shape index: {}]
  %s1 = inlined_call_operand.hbm [shape: bf16[128,256], index: 1, kind: input, shape index: {}]
  %s2 = inlined_call_operand.hbm [shape: f32[8,128], index: 2, kind: input, shape index: {}]
  %s3 = inlined_call_operand.hbm [shape: bf16[384,128], index: 3, kind: input, shape index: {}]
  %s4 = inlined_call_operand.hbm [shape: f32[2,8,128], index: 4, kind: output, shape index: {}]
  %s5 = sld [smem:[#allocation0]]
  $region65: #{tpu_custom_call.1} parent=0
    _
  %s7 = ssub.s32 1, %s5
  %s8 = scalar_select 0, %s7, %s5
  $region1: #{tpu_custom_call.1} parent=0
    #allocation3 [shape = 'u8[4096]{0}', space=vmem, size = 0x1000, scoped, tag = 'input window, operand 0']
    #allocation4 [shape = 's32[2]{0}', space=sflag, size = 0x8, scoped, tag = 'scoped memory for tpu_custom_call.1']
    #allocation5 [shape = 's32[2]{0}', space=sflag, size = 0x8, scoped, tag = 'scoped memory for tpu_custom_call.1']
    #allocation6 [shape = 'u8[65536]{0}', space=vmem, size = 0x10000, scoped, tag = 'input window, operand 1, single buffered']
    #allocation7 [shape = 's32[1]{0}', space=sflag, size = 0x4, scoped, tag = 'scoped memory for tpu_custom_call.1']
    #allocation8 [shape = 'u8[4096]{0}', space=vmem, size = 0x1000, scoped, tag = 'input window, operand 2, single buffered']
    #allocation9 [shape = 'u8[98304]{0}', space=vmem, size = 0x18000, scoped, tag = 'input window, operand 3, single buffered']
    #allocation10 [shape = 's32[1]{0}', space=sflag, size = 0x4, scoped, tag = 'scoped memory for tpu_custom_call.1']
    #allocation11 [shape = 'u8[8192]{0}', space=vmem, size = 0x2000, scoped, tag = 'output window, operand 0']
    %9 = vsyncpa [#allocation4], 0
    %s10 = scalar_lea.sflag [#allocation4], 1
    %11 = vsyncpa %s10, 0
    %12 = vsyncpa [#allocation7], 0
    %13 = vsyncpa [#allocation10], 0
    %14 = vsyncpa [#allocation5], 0
    %s15 = scalar_lea.sflag [#allocation5], 1
    %16 = vsyncpa %s15, 0
    loop: start=0, step=1, limit=4
    $region2: #{tpu_custom_call.1} parent=1 // loop_pre_header
      _
    $region3: #{tpu_custom_call.1} parent=1 // loop_header
      %s18 = sphi 0, %s22
      %p19 = scmp.ge.s32.totalorder %s18, 4
      %s28 = sphi 0, %s30
      %s31 = sphi 0, %s28
      %s32 = sphi 0, %s31
      %s48 = sphi 0, %s32
      %s52 = sphi 0, %s52
      %s54 = sphi 0, %s52
      %s55 = sphi 0, %s54
      %s69 = sphi 0, %s55
      %s73 = sphi 0, %s73
      %s75 = sphi 0, %s73
      %s76 = sphi 0, %s75
      %s90 = sphi 0, %s76
      %s94 = sphi 0, %s94
      %s96 = sphi 0, %s94
      %s97 = sphi 0, %s96
      %s111 = sphi 0, %s97
      %s117 = sphi 0, %s119
      %s120 = sphi 0, %s117
      %s121 = sphi 0, %s120
      %s137 = sphi 0, %s121
    $region4: #{tpu_custom_call.1} parent=1 // loop_header_branch
      %21 = sbr.rel (%p19) target = $region8
    $region5: #{tpu_custom_call.1} parent=1 // loop_body
      %s23 = ssub.s32 %s18, 1
      %s24 = ssub.s32 %s18, 2
      %s25 = sadd.s32 %s18, 1
      %s26 = ssub.s32 %s18, %s25
      %p27 = scmp.eq.s32.totalorder %s26, 0
      %s29 = sadd.s32 %s28, 1
      %s30 = scalar_select %p27, %s28, %s29
      %p33 = pneg %p27
      %p34 = scmp.eq.s32.totalorder %s18, 1
      %p35 = por %p33, %p34
      %p36 = scmp.ne.s32.totalorder %s28, %s31
      %p37 = scmp.eq.s32.totalorder %s18, 0
      %p38 = por %p36, %p37
      %p39 = scmp.ne.s32.totalorder %s28, %s31
      %p40 = scmp.eq.s32.totalorder %s23, 1
      %p41 = por %p39, %p40
      %p42 = scmp.ne.s32.totalorder %s31, %s32
      %p43 = scmp.eq.s32.totalorder %s23, 0
      %p44 = por %p42, %p43
      %p45 = scmp.ne.s32.totalorder %s31, %s32
      %p46 = scmp.eq.s32.totalorder %s24, 1
      %p47 = por %p45, %p46
      %p49 = scmp.ne.s32.totalorder %s32, %s48
      %p50 = scmp.eq.s32.totalorder %s24, 0
      %p51 = por %p49, %p50
      %s53 = sadd.s32 %s52, 1
      %p56 = scmp.eq.s32.totalorder %s18, 1
      %p57 = scmp.ne.s32.totalorder %s52, %s54
      %p58 = scmp.eq.s32.totalorder %s18, 0
      %p59 = por %p57, %p58
      %p60 = scmp.ne.s32.totalorder %s52, %s54
      %p61 = scmp.eq.s32.totalorder %s23, 1
      %p62 = por %p60, %p61
      %p63 = scmp.ne.s32.totalorder %s54, %s55
      %p64 = scmp.eq.s32.totalorder %s23, 0
      %p65 = por %p63, %p64
      %p66 = scmp.ne.s32.totalorder %s54, %s55
      %p67 = scmp.eq.s32.totalorder %s24, 1
      %p68 = por %p66, %p67
      %p70 = scmp.ne.s32.totalorder %s55, %s69
      %p71 = scmp.eq.s32.totalorder %s24, 0
      %p72 = por %p70, %p71
      %s74 = sadd.s32 %s73, 1
      %p77 = scmp.eq.s32.totalorder %s18, 1
      %p78 = scmp.ne.s32.totalorder %s73, %s75
      %p79 = scmp.eq.s32.totalorder %s18, 0
      %p80 = por %p78, %p79
      %p81 = scmp.ne.s32.totalorder %s73, %s75
      %p82 = scmp.eq.s32.totalorder %s23, 1
      %p83 = por %p81, %p82
      %p84 = scmp.ne.s32.totalorder %s75, %s76
      %p85 = scmp.eq.s32.totalorder %s23, 0
      %p86 = por %p84, %p85
      %p87 = scmp.ne.s32.totalorder %s75, %s76
      %p88 = scmp.eq.s32.totalorder %s24, 1
      %p89 = por %p87, %p88
      %p91 = scmp.ne.s32.totalorder %s76, %s90
      %p92 = scmp.eq.s32.totalorder %s24, 0
      %p93 = por %p91, %p92
      %s95 = sadd.s32 %s94, 1
      %p98 = scmp.eq.s32.totalorder %s18, 1
      %p99 = scmp.ne.s32.totalorder %s94, %s96
      %p100 = scmp.eq.s32.totalorder %s18, 0
      %p101 = por %p99, %p100
      %p102 = scmp.ne.s32.totalorder %s94, %s96
      %p103 = scmp.eq.s32.totalorder %s23, 1
      %p104 = por %p102, %p103
      %p105 = scmp.ne.s32.totalorder %s96, %s97
      %p106 = scmp.eq.s32.totalorder %s23, 0
      %p107 = por %p105, %p106
      %p108 = scmp.ne.s32.totalorder %s96, %s97
      %p109 = scmp.eq.s32.totalorder %s24, 1
      %p110 = por %p108, %p109
      %p112 = scmp.ne.s32.totalorder %s97, %s111
      %p113 = scmp.eq.s32.totalorder %s24, 0
      %p114 = por %p112, %p113
      %s115 = ssub.s32 %s18, %s25
      %p116 = scmp.eq.s32.totalorder %s115, 0
      %s118 = sadd.s32 %s117, 1
      %s119 = scalar_select %p116, %s117, %s118
      %p122 = pneg %p116
      %p123 = scmp.eq.s32.totalorder %s18, 1
      %p124 = por %p122, %p123
      %p125 = scmp.ne.s32.totalorder %s117, %s120
      %p126 = scmp.eq.s32.totalorder %s18, 0
      %p127 = por %p125, %p126
      %p128 = scmp.ne.s32.totalorder %s117, %s120
      %p129 = scmp.eq.s32.totalorder %s23, 1
      %p130 = por %p128, %p129
      %p131 = scmp.ne.s32.totalorder %s120, %s121
      %p132 = scmp.eq.s32.totalorder %s23, 0
      %p133 = por %p131, %p132
      %p134 = scmp.ne.s32.totalorder %s120, %s121
      %p135 = scmp.eq.s32.totalorder %s24, 1
      %p136 = por %p134, %p135
      %p138 = scmp.ne.s32.totalorder %s121, %s137
      %p139 = scmp.eq.s32.totalorder %s24, 0
      %p140 = por %p138, %p139
      %p141 = scmp.le.s32.totalorder 1, %s18
      %p142 = scmp.lt.s32.totalorder %s18, 3
      %p143 = pnand %p141, %p142
      %p144 = pneg %p143
      // Predicated region
      $region9: #{tpu_custom_call.1} parent=5 // pred_check
        _
      $region10: #{tpu_custom_call.1} parent=5 // pred_check_branch
        %146 = sbr.rel (%p143) target = $region12
      $region11: #{tpu_custom_call.1} parent=5 // pred_region
        %s147 = ssub.s32 %s18, 1
        // Predicated region
        $region13: #{tpu_custom_call.1} parent=11 // pred_check
          %p148 = pneg %p65
        $region14: #{tpu_custom_call.1} parent=11 // pred_check_branch
          %150 = sbr.rel (%p148) target = $region16
        $region15: #{tpu_custom_call.1} parent=11 // pred_region
          %s152 = ssub.s32 2048, 2048
          %153 = vsyncadd [#allocation7], %s152
          %s154 = sshll.u32 [#allocation6], 4
          %s155 = int_to_ptr.vmem [resolvable:$true] %s154
          %160 = dma.hbm_to_vmem [thread:$0]  %s1, 2048, %s155, [#allocation7], 128, 128, 8
        $region16: #{tpu_custom_call.1} parent=11 // pred_fallthru
          _
        // Predicated region
        $region17: #{tpu_custom_call.1} parent=11 // pred_check
          %p161 = pneg %p86
        $region18: #{tpu_custom_call.1} parent=11 // pred_check_branch
          %163 = sbr.rel (%p161) target = $region20
        $region19: #{tpu_custom_call.1} parent=11 // pred_region
          %s165 = ssub.s32 128, 128
          %166 = vsyncadd [#allocation7], %s165
          %s168 = sshll.u32 [#allocation8], 4
          %s169 = int_to_ptr.vmem [resolvable:$true] %s168
          %171 = dma.hbm_to_vmem [thread:$0]  %s2, 128, %s169, [#allocation7]
        $region20: #{tpu_custom_call.1} parent=11 // pred_fallthru
          _
        // Predicated region
        $region21: #{tpu_custom_call.1} parent=11 // pred_check
          %p172 = pneg %p107
        $region22: #{tpu_custom_call.1} parent=11 // pred_check_branch
          %174 = sbr.rel (%p172) target = $region24
        $region23: #{tpu_custom_call.1} parent=11 // pred_region
          %s176 = ssub.s32 3072, 3072
          %177 = vsyncadd [#allocation10], %s176
          %s178 = sshll.u32 [#allocation9], 4
          %s179 = int_to_ptr.vmem [resolvable:$true] %s178
          %184 = dma.hbm_to_vmem [thread:$0]  %s3, 3072, %s179, [#allocation10], 64, 64, 4
        $region24: #{tpu_custom_call.1} parent=11 // pred_fallthru
          _
      $region12: #{tpu_custom_call.1} parent=5 // pred_fallthru
        _
      %p185 = scmp.lt.s32.totalorder %s18, 2
      // Predicated region
      $region25: #{tpu_custom_call.1} parent=5 // pred_check
        %p186 = pneg %p185
      $region26: #{tpu_custom_call.1} parent=5 // pred_check_branch
        %188 = sbr.rel (%p186) target = $region28
      $region27: #{tpu_custom_call.1} parent=5 // pred_region
        // Predicated region
        $region29: #{tpu_custom_call.1} parent=27 // pred_check
          %p189 = pneg %p38
        $region30: #{tpu_custom_call.1} parent=27 // pred_check_branch
          %191 = sbr.rel (%p189) target = $region32
        $region31: #{tpu_custom_call.1} parent=27 // pred_region
          %s192 = sand.u32 %s28, 1
          %s193 = scalar_lea.sflag [#allocation4], %s192
          %s194 = sand.u32 %s28, 1
          %s195 = smul.addr %s194, 4
          %s196 = scalar_lea.vmem [#allocation3], %s195
          %s198 = ssub.s32 64, 64
          %199 = vsyncadd %s193, %s198
          %s200 = smul.addr %s18, 64
          %s201 = scalar_lea.hbm %s0, %s200
          %s203 = sshll.u32 %s196, 4
          %s204 = int_to_ptr.vmem [resolvable:$true] %s203
          %206 = dma.hbm_to_vmem [thread:$0]  %s201, 64, %s204, %s193
        $region32: #{tpu_custom_call.1} parent=27 // pred_fallthru
          _
      $region28: #{tpu_custom_call.1} parent=5 // pred_fallthru
        _
      %p207 = scmp.le.s32.totalorder 1, %s18
      %p208 = scmp.lt.s32.totalorder %s18, 3
      %p209 = pnand %p207, %p208
      %p210 = pneg %p209
      // Predicated region
      $region33: #{tpu_custom_call.1} parent=5 // pred_check
        _
      $region34: #{tpu_custom_call.1} parent=5 // pred_check_branch
        %212 = sbr.rel (%p209) target = $region36
      $region35: #{tpu_custom_call.1} parent=5 // pred_region
        %s213 = ssub.s32 %s18, 1
        %s214 = sand.u32 %s31, 1
        %s215 = scalar_lea.sflag [#allocation4], %s214
        %s216 = sand.u32 %s31, 1
        %s217 = smul.addr %s216, 4
        %s218 = scalar_lea.vmem [#allocation3], %s217
        // Predicated region
        $region37: #{tpu_custom_call.1} parent=35 // pred_check
          %p219 = pneg %p44
        $region38: #{tpu_custom_call.1} parent=35 // pred_check_branch
          %221 = sbr.rel (%p219) target = $region40
        $region39: #{tpu_custom_call.1} parent=35 // pred_region
          %222 = dma.done %s215, 64
        $region40: #{tpu_custom_call.1} parent=35 // pred_fallthru
          _
        // Predicated region
        $region41: #{tpu_custom_call.1} parent=35 // pred_check
          %p223 = pneg %p65
        $region42: #{tpu_custom_call.1} parent=35 // pred_check_branch
          %225 = sbr.rel (%p223) target = $region44
        $region43: #{tpu_custom_call.1} parent=35 // pred_region
          %226 = dma.done [#allocation7], 2048
        $region44: #{tpu_custom_call.1} parent=35 // pred_fallthru
          _
        // Predicated region
        $region45: #{tpu_custom_call.1} parent=35 // pred_check
          %p227 = pneg %p86
        $region46: #{tpu_custom_call.1} parent=35 // pred_check_branch
          %229 = sbr.rel (%p227) target = $region48
        $region47: #{tpu_custom_call.1} parent=35 // pred_region
          %230 = dma.done [#allocation7], 128
        $region48: #{tpu_custom_call.1} parent=35 // pred_fallthru
          _
        // Predicated region
        $region49: #{tpu_custom_call.1} parent=35 // pred_check
          %p231 = pneg %p107
        $region50: #{tpu_custom_call.1} parent=35 // pred_check_branch
          %233 = sbr.rel (%p231) target = $region52
        $region51: #{tpu_custom_call.1} parent=35 // pred_region
          %234 = dma.done [#allocation10], 3072
        $region52: #{tpu_custom_call.1} parent=35 // pred_fallthru
          _
        %s235 = sand.u32 %s31, 1
        %s236 = scalar_lea.sflag [#allocation4], %s235
        %s237 = sand.u32 %s31, 1
        %s238 = smul.addr %s237, 4
        %s239 = scalar_lea.vmem [#allocation3], %s238
        %p240 = pneg %p44
        %p241 = pneg %p41
        %p242 = pneg %p65
        %p243 = pneg %p62
        %p244 = pneg %p86
        %p245 = pneg %p83
        %p246 = pneg %p107
        %p247 = pneg %p104
        %p248 = pneg %p133
        %p249 = pneg %p130
        %s250 = sand.u32 %s120, 1
        %s251 = scalar_lea.sflag [#allocation5], %s250
        %s252 = sand.u32 %s120, 1
        %s253 = smul.addr %s252, 8
        %s254 = scalar_lea.vmem [#allocation11], %s253
        %v256 = vld [vmem:[%s218] sm:$0xf]
        %v257 = vld [vmem:[#allocation8] sm:$0xff]
        %v258 = vld [vmem:[#allocation6] sm:$0xff]
        %v259 = vld [vmem:[#allocation6 + $0x8] sm:$0xff]
        %v260 = vld [vmem:[#allocation6 + $0x10] sm:$0xff]
        %v261 = vld [vmem:[#allocation6 + $0x18] sm:$0xff]
        %v262 = vld [vmem:[#allocation6 + $0x20] sm:$0xff]
        %v263 = vld [vmem:[#allocation6 + $0x28] sm:$0xff]
        %v264 = vld [vmem:[#allocation6 + $0x30] sm:$0xff]
        %v265 = vld [vmem:[#allocation6 + $0x38] sm:$0xff]
        %v266 = vld [vmem:[#allocation6 + $0x40] sm:$0xff]
        %v267 = vld [vmem:[#allocation6 + $0x48] sm:$0xff]
        %v268 = vld [vmem:[#allocation6 + $0x50] sm:$0xff]
        %v269 = vld [vmem:[#allocation6 + $0x58] sm:$0xff]
        %v270 = vld [vmem:[#allocation6 + $0x60] sm:$0xff]
        %v271 = vld [vmem:[#allocation6 + $0x68] sm:$0xff]
        %v272 = vld [vmem:[#allocation6 + $0x70] sm:$0xff]
        %v273 = vld [vmem:[#allocation6 + $0x78] sm:$0xff]
        %v290 = vunpack.c.l.b16 %v258
        %v291 = vunpack.c.h.b16 %v258
        %v292 = vunpack.c.l.b16 %v259
        %v293 = vunpack.c.h.b16 %v259
        %v294 = vunpack.c.l.b16 %v260
        %v295 = vunpack.c.h.b16 %v260
        %v296 = vunpack.c.l.b16 %v261
        %v297 = vunpack.c.h.b16 %v261
        %v298 = vunpack.c.l.b16 %v262
        %v299 = vunpack.c.h.b16 %v262
        %v300 = vunpack.c.l.b16 %v263
        %v301 = vunpack.c.h.b16 %v263
        %v302 = vunpack.c.l.b16 %v264
        %v303 = vunpack.c.h.b16 %v264
        %v304 = vunpack.c.l.b16 %v265
        %v305 = vunpack.c.h.b16 %v265
        %v306 = vunpack.c.l.b16 %v266
        %v307 = vunpack.c.h.b16 %v266
        %v308 = vunpack.c.l.b16 %v267
        %v309 = vunpack.c.h.b16 %v267
        %v310 = vunpack.c.l.b16 %v268
        %v311 = vunpack.c.h.b16 %v268
        %v312 = vunpack.c.l.b16 %v269
        %v313 = vunpack.c.h.b16 %v269
        %v314 = vunpack.c.l.b16 %v270
        %v315 = vunpack.c.h.b16 %v270
        %v316 = vunpack.c.l.b16 %v271
        %v317 = vunpack.c.h.b16 %v271
        %v318 = vunpack.c.l.b16 %v272
        %v319 = vunpack.c.h.b16 %v272
        %v320 = vunpack.c.l.b16 %v273
        %v321 = vunpack.c.h.b16 %v273
        %v322 = vpack.c.b16 %v292, %v290
        %v323 = vpack.c.b16 %v293, %v291
        %v324 = vpack.c.b16 %v296, %v294
        %v325 = vpack.c.b16 %v297, %v295
        %v326 = vpack.c.b16 %v300, %v298
        %v327 = vpack.c.b16 %v301, %v299
        %v328 = vpack.c.b16 %v304, %v302
        %v329 = vpack.c.b16 %v305, %v303
        %v330 = vpack.c.b16 %v308, %v306
        %v331 = vpack.c.b16 %v309, %v307
        %v332 = vpack.c.b16 %v312, %v310
        %v333 = vpack.c.b16 %v313, %v311
        %v334 = vpack.c.b16 %v316, %v314
        %v335 = vpack.c.b16 %v317, %v315
        %v336 = vpack.c.b16 %v320, %v318
        %v337 = vpack.c.b16 %v321, %v319
        %354 = vmatprep.subr.bf16.mxu0 %v323
        %355 = vmatpush1.bf16.msra.mxu0 %v322
        %356 = vmatprep.subr.bf16.mxu0 %v325
        %357 = vmatpush1.bf16.msra.mxu0 %v324
        %358 = vmatprep.subr.bf16.mxu0 %v327
        %359 = vmatpush1.bf16.msra.mxu0 %v326
        %360 = vmatprep.subr.bf16.mxu0 %v329
        %361 = vmatpush1.bf16.msra.mxu0 %v328
        %362 = vmatprep.subr.bf16.mxu0 %v331
        %363 = vmatpush1.bf16.msra.mxu0 %v330
        %364 = vmatprep.subr.bf16.mxu0 %v333
        %365 = vmatpush1.bf16.msra.mxu0 %v332
        %366 = vmatprep.subr.bf16.mxu0 %v335
        %367 = vmatpush1.bf16.msra.mxu0 %v334
        %368 = vmatprep.subr.bf16.mxu0 %v337
        %369 = vmatpush1.bf16.msra.mxu0 %v336
        %370 = vmatprep.subr.bf16.mxu0 0
        %371 = vmatpush1.bf16.msra.mxu0 0
        %372 = vmatprep.subr.bf16.mxu0 0
        %373 = vmatpush1.bf16.msra.mxu0 0
        %374 = vmatprep.subr.bf16.mxu0 0
        %375 = vmatpush1.bf16.msra.mxu0 0
        %376 = vmatprep.subr.bf16.mxu0 0
        %377 = vmatpush1.bf16.msra.mxu0 0
        %378 = vmatprep.subr.bf16.mxu0 0
        %379 = vmatpush1.bf16.msra.mxu0 0
        %380 = vmatprep.subr.bf16.mxu0 0
        %381 = vmatpush1.bf16.msra.mxu0 0
        %382 = vmatprep.subr.bf16.mxu0 0
        %383 = vmatpush1.bf16.msra.mxu0 0
        %384 = vmatprep.subr.bf16.mxu0 0
        %385 = vmatpush1.bf16.msra.mxu0 0
        %386 = vmatprep.mubr.bf16.mxu0 0
        %387 = vmatmul.mubr.bf16.gmra.mrb[0].mxu0 %v256
        %v388 = vpop.f32.mrb[0].mxu0
        %v389 = vadd.f32 0.0, %v388
        %v390 = vpop.f32.mrb[0].mxu0
        %v391 = vadd.f32 0.0, %v390
        %v392 = vpop.f32.mrb[0].mxu0
        %v393 = vpop.f32.mrb[0].mxu0
        %394 = vdwg.mxu0
        %v395 = vlaneseq
        %v396 = vshrl.u32 %v395, 7
        %v397 = vsub.s32 4, %v396
        %v398 = vrot.slane %v257, %v397
        %v399 = vmul.f32 %v391, %v398
        %v400 = vlaneseq
        %v401 = vshrl.u32 %v400, 7
        %v402 = vsub.s32 5, %v401
        %v403 = vrot.slane %v257, %v402
        %v404 = vadd.f32 %v399, %v403
        %v405 = vlaneseq
        %v406 = vshrl.u32 %v405, 7
        %v407 = vsub.s32 0, %v406
        %v408 = vrot.slane %v257, %v407
        %v409 = vmul.f32 %v389, %v408
        %v410 = vlaneseq
        %v411 = vshrl.u32 %v410, 7
        %v412 = vsub.s32 1, %v411
        %v413 = vrot.slane %v257, %v412
        %v414 = vadd.f32 %v409, %v413
        %v415 = vmax.f32 %v414, 0.0
        %v416 = vpack.c.bf16 %v415, %v415
        %vm417 = vcmask 1040384
        %vm418 = vsmask.f32 256
        %vm419 = vmand %vm417, %vm418
        %v420 = vld [vmem:[#allocation2] sm:$0x1]
        %v421 = vsel %vm419, 0, %v420
        %422 = vst [vmem:[#allocation2] sm:$0x1] %v421
        %vm423 = vsmask.f32 7938
        %vm424 = vmand %vm417, %vm423
        %v425 = vld [vmem:[#allocation2 + $0x4] sm:$0x1]
        %v426 = vsel %vm424, 0, %v425
        %427 = vst [vmem:[#allocation2 + $0x4] sm:$0x1] %v426
        %v429 = vunpack.c.l.b16 %v416
        %v430 = vpack.c.b16 %v429, %v429
        %v432 = vshrl.u32 %v430, 16
        %v434 = vrot.slane %v432, 7
        %v435 = vshll.u32 %v430, 16
        %v437 = vor.u32 %v434, %v435
        %v438 = vrot.slane %v434, 4
        %vm441 = vcmask 1043456
        %vm442 = vmand %vm441, %vm423
        %v443 = vld [vmem:[#allocation2] sm:$0xf]
        %v444 = vsel %vm442, %v437, %v443
        %445 = vst [vmem:[#allocation2] sm:$0xf] %v444
        %v446 = vld [vmem:[#allocation2 + $0x4] sm:$0x1]
        %v447 = vsel %vm419, %v438, %v446
        %448 = vst [vmem:[#allocation2 + $0x4] sm:$0x1] %v447
        %v449 = vld [vmem:[#allocation2] sm:$0xf]
        %v450 = vld [vmem:[#allocation2 + $0x4] sm:$0x1]
        %v451 = vld [vmem:[#allocation2] sm:$0xe]
        %v454 = vunpack.c.l.b16 %v449
        %v455 = vunpack.c.l.b16 %v450
        %v456 = vpack.c.b16 %v455, %v454
        %v458 = vshrl.u32 %v456, 16
        %v460 = vshll.u32 %v456, 16
        %v462 = vrot.slane %v460, 1
        %v463 = vor.u32 %v458, %v462
        %v466 = vunpack.c.l.b16 %v451
        %v467 = vpack.c.b16 %v455, %v466
        %v468 = vrot.slane %v467, 1
        %v470 = vld [vmem:[#allocation9] sm:$0xf]
        %v471 = vld [vmem:[#allocation9 + $0x4] sm:$0xf]
        %v472 = vld [vmem:[#allocation9 + $0x8] sm:$0xf]
        %v473 = vld [vmem:[#allocation9 + $0xc] sm:$0xf]
        %v474 = vld [vmem:[#allocation9 + $0x10] sm:$0xf]
        %v475 = vld [vmem:[#allocation9 + $0x14] sm:$0xf]
        %v476 = vld [vmem:[#allocation9 + $0x18] sm:$0xf]
        %v477 = vld [vmem:[#allocation9 + $0x1c] sm:$0xf]
        %v478 = vld [vmem:[#allocation9 + $0x20] sm:$0xf]
        %v479 = vld [vmem:[#allocation9 + $0x24] sm:$0xf]
        %v480 = vld [vmem:[#allocation9 + $0x28] sm:$0xf]
        %v481 = vld [vmem:[#allocation9 + $0x2c] sm:$0xf]
        %v482 = vld [vmem:[#allocation9 + $0x30] sm:$0xf]
        %v483 = vld [vmem:[#allocation9 + $0x34] sm:$0xf]
        %v484 = vld [vmem:[#allocation9 + $0x38] sm:$0xf]
        %v485 = vld [vmem:[#allocation9 + $0x3c] sm:$0xf]
        %v486 = vld [vmem:[#allocation9 + $0x40] sm:$0xf]
        %v487 = vld [vmem:[#allocation9 + $0x44] sm:$0xf]
        %v488 = vld [vmem:[#allocation9 + $0x48] sm:$0xf]
        %v489 = vld [vmem:[#allocation9 + $0x4c] sm:$0xf]
        %v490 = vld [vmem:[#allocation9 + $0x50] sm:$0xf]
        %v491 = vld [vmem:[#allocation9 + $0x54] sm:$0xf]
        %v492 = vld [vmem:[#allocation9 + $0x58] sm:$0xf]
        %v493 = vld [vmem:[#allocation9 + $0x5c] sm:$0xf]
        %v494 = vld [vmem:[#allocation9 + $0x60] sm:$0xf]
        %v495 = vld [vmem:[#allocation9 + $0x64] sm:$0xf]
        %v496 = vld [vmem:[#allocation9 + $0x68] sm:$0xf]
        %v497 = vld [vmem:[#allocation9 + $0x6c] sm:$0xf]
        %v498 = vld [vmem:[#allocation9 + $0x70] sm:$0xf]
        %v499 = vld [vmem:[#allocation9 + $0x74] sm:$0xf]
        %v500 = vld [vmem:[#allocation9 + $0x78] sm:$0xf]
        %v501 = vld [vmem:[#allocation9 + $0x7c] sm:$0xf]
        %v502 = vld [vmem:[#allocation9 + $0x80] sm:$0xf]
        %v503 = vld [vmem:[#allocation9 + $0x84] sm:$0xf]
        %v504 = vld [vmem:[#allocation9 + $0x88] sm:$0xf]
        %v505 = vld [vmem:[#allocation9 + $0x8c] sm:$0xf]
        %v506 = vld [vmem:[#allocation9 + $0x90] sm:$0xf]
        %v507 = vld [vmem:[#allocation9 + $0x94] sm:$0xf]
        %v508 = vld [vmem:[#allocation9 + $0x98] sm:$0xf]
        %v509 = vld [vmem:[#allocation9 + $0x9c] sm:$0xf]
        %v510 = vld [vmem:[#allocation9 + $0xa0] sm:$0xf]
        %v511 = vld [vmem:[#allocation9 + $0xa4] sm:$0xf]
        %v512 = vld [vmem:[#allocation9 + $0xa8] sm:$0xf]
        %v513 = vld [vmem:[#allocation9 + $0xac] sm:$0xf]
        %v514 = vld [vmem:[#allocation9 + $0xb0] sm:$0xf]
        %v515 = vld [vmem:[#allocation9 + $0xb4] sm:$0xf]
        %v516 = vld [vmem:[#allocation9 + $0xb8] sm:$0xf]
        %v517 = vld [vmem:[#allocation9 + $0xbc] sm:$0xf]
        %v566 = vunpack.c.l.b16 %v470
        %v567 = vunpack.c.l.b16 %v471
        %v568 = vunpack.c.l.b16 %v472
        %v569 = vunpack.c.l.b16 %v473
        %v570 = vunpack.c.l.b16 %v474
        %v571 = vunpack.c.l.b16 %v475
        %v572 = vunpack.c.l.b16 %v476
        %v573 = vunpack.c.l.b16 %v477
        %v574 = vunpack.c.l.b16 %v478
        %v575 = vunpack.c.l.b16 %v479
        %v576 = vunpack.c.l.b16 %v480
        %v577 = vunpack.c.l.b16 %v481
        %v578 = vunpack.c.l.b16 %v482
        %v579 = vunpack.c.l.b16 %v483
        %v580 = vunpack.c.l.b16 %v484
        %v581 = vunpack.c.l.b16 %v485
        %v582 = vunpack.c.l.b16 %v486
        %v583 = vunpack.c.l.b16 %v487
        %v584 = vunpack.c.l.b16 %v488
        %v585 = vunpack.c.l.b16 %v489
        %v586 = vunpack.c.l.b16 %v490
        %v587 = vunpack.c.l.b16 %v491
        %v588 = vunpack.c.l.b16 %v492
        %v589 = vunpack.c.l.b16 %v493
        %v590 = vunpack.c.l.b16 %v494
        %v591 = vunpack.c.l.b16 %v495
        %v592 = vunpack.c.l.b16 %v496
        %v593 = vunpack.c.l.b16 %v497
        %v594 = vunpack.c.l.b16 %v498
        %v595 = vunpack.c.l.b16 %v499
        %v596 = vunpack.c.l.b16 %v500
        %v597 = vunpack.c.l.b16 %v501
        %v598 = vunpack.c.l.b16 %v502
        %v599 = vunpack.c.l.b16 %v503
        %v600 = vunpack.c.l.b16 %v504
        %v601 = vunpack.c.l.b16 %v505
        %v602 = vunpack.c.l.b16 %v506
        %v603 = vunpack.c.l.b16 %v507
        %v604 = vunpack.c.l.b16 %v508
        %v605 = vunpack.c.l.b16 %v509
        %v606 = vunpack.c.l.b16 %v510
        %v607 = vunpack.c.l.b16 %v511
        %v608 = vunpack.c.l.b16 %v512
        %v609 = vunpack.c.l.b16 %v513
        %v610 = vunpack.c.l.b16 %v514
        %v611 = vunpack.c.l.b16 %v515
        %v612 = vunpack.c.l.b16 %v516
        %v613 = vunpack.c.l.b16 %v517
        %v614 = vpack.c.b16 %v567, %v566
        %v615 = vpack.c.b16 %v569, %v568
        %v616 = vpack.c.b16 %v571, %v570
        %v617 = vpack.c.b16 %v573, %v572
        %v618 = vpack.c.b16 %v575, %v574
        %v619 = vpack.c.b16 %v577, %v576
        %v620 = vpack.c.b16 %v579, %v578
        %v621 = vpack.c.b16 %v581, %v580
        %v622 = vpack.c.b16 %v583, %v582
        %v623 = vpack.c.b16 %v585, %v584
        %v624 = vpack.c.b16 %v587, %v586
        %v625 = vpack.c.b16 %v589, %v588
        %v626 = vpack.c.b16 %v591, %v590
        %v627 = vpack.c.b16 %v593, %v592
        %v628 = vpack.c.b16 %v595, %v594
        %v629 = vpack.c.b16 %v597, %v596
        %v630 = vpack.c.b16 %v599, %v598
        %v631 = vpack.c.b16 %v601, %v600
        %v632 = vpack.c.b16 %v603, %v602
        %v633 = vpack.c.b16 %v605, %v604
        %v634 = vpack.c.b16 %v607, %v606
        %v635 = vpack.c.b16 %v609, %v608
        %v636 = vpack.c.b16 %v611, %v610
        %v637 = vpack.c.b16 %v613, %v612
        %662 = vmatprep.subr.bf16.mxu0 0
        %663 = vmatpush1.bf16.msra.mxu0 %v614
        %664 = vmatprep.subr.bf16.mxu0 0
        %665 = vmatpush1.bf16.msra.mxu0 %v615
        %666 = vmatprep.subr.bf16.mxu0 0
        %667 = vmatpush1.bf16.msra.mxu0 %v616
        %668 = vmatprep.subr.bf16.mxu0 0
        %669 = vmatpush1.bf16.msra.mxu0 %v617
        %670 = vmatprep.subr.bf16.mxu0 0
        %671 = vmatpush1.bf16.msra.mxu0 %v618
        %672 = vmatprep.subr.bf16.mxu0 0
        %673 = vmatpush1.bf16.msra.mxu0 %v619
        %674 = vmatprep.subr.bf16.mxu0 0
        %675 = vmatpush1.bf16.msra.mxu0 %v620
        %676 = vmatprep.subr.bf16.mxu0 0
        %677 = vmatpush1.bf16.msra.mxu0 %v621
        %678 = vmatprep.subr.bf16.mxu0 0
        %679 = vmatpush1.bf16.msra.mxu0 %v622
        %680 = vmatprep.subr.bf16.mxu0 0
        %681 = vmatpush1.bf16.msra.mxu0 %v623
        %682 = vmatprep.subr.bf16.mxu0 0
        %683 = vmatpush1.bf16.msra.mxu0 %v624
        %684 = vmatprep.subr.bf16.mxu0 0
        %685 = vmatpush1.bf16.msra.mxu0 %v625
        %686 = vmatprep.subr.bf16.mxu0 0
        %687 = vmatpush1.bf16.msra.mxu0 %v626
        %688 = vmatprep.subr.bf16.mxu0 0
        %689 = vmatpush1.bf16.msra.mxu0 %v627
        %690 = vmatprep.subr.bf16.mxu0 0
        %691 = vmatpush1.bf16.msra.mxu0 %v628
        %692 = vmatprep.subr.bf16.mxu0 0
        %693 = vmatpush1.bf16.msra.mxu0 %v629
        %694 = vmatprep.mubr.bf16.mxu0 %v463
        %695 = vmatmul.mubr.bf16.gmra.mrb[0].mxu0 %v449
        %v696 = vpop.f32.mrb[0].mxu0
        %v697 = vadd.f32 0.0, %v696
        %v698 = vpop.f32.mrb[0].mxu0
        %v699 = vpop.f32.mrb[0].mxu0
        %v700 = vpop.f32.mrb[0].mxu0
        %701 = vdwg.mxu0
        %702 = vmatprep.subr.bf16.mxu0 0
        %703 = vmatpush1.bf16.msra.mxu0 %v630
        %704 = vmatprep.subr.bf16.mxu0 0
        %705 = vmatpush1.bf16.msra.mxu0 %v631
        %706 = vmatprep.subr.bf16.mxu0 0
        %707 = vmatpush1.bf16.msra.mxu0 %v632
        %708 = vmatprep.subr.bf16.mxu0 0
        %709 = vmatpush1.bf16.msra.mxu0 %v633
        %710 = vmatprep.subr.bf16.mxu0 0
        %711 = vmatpush1.bf16.msra.mxu0 %v634
        %712 = vmatprep.subr.bf16.mxu0 0
        %713 = vmatpush1.bf16.msra.mxu0 %v635
        %714 = vmatprep.subr.bf16.mxu0 0
        %715 = vmatpush1.bf16.msra.mxu0 %v636
        %716 = vmatprep.subr.bf16.mxu0 0
        %717 = vmatpush1.bf16.msra.mxu0 %v637
        %718 = vmatprep.subr.bf16.mxu0 0
        %719 = vmatpush1.bf16.msra.mxu0 0
        %720 = vmatprep.subr.bf16.mxu0 0
        %721 = vmatpush1.bf16.msra.mxu0 0
        %722 = vmatprep.subr.bf16.mxu0 0
        %723 = vmatpush1.bf16.msra.mxu0 0
        %724 = vmatprep.subr.bf16.mxu0 0
        %725 = vmatpush1.bf16.msra.mxu0 0
        %726 = vmatprep.subr.bf16.mxu0 0
        %727 = vmatpush1.bf16.msra.mxu0 0
        %728 = vmatprep.subr.bf16.mxu0 0
        %729 = vmatpush1.bf16.msra.mxu0 0
        %730 = vmatprep.subr.bf16.mxu0 0
        %731 = vmatpush1.bf16.msra.mxu0 0
        %732 = vmatprep.subr.bf16.mxu0 0
        %733 = vmatpush1.bf16.msra.mxu0 0
        %734 = vmatprep.mubr.bf16.mxu0 0
        %735 = vmatmul.mubr.bf16.gmra.mrb[0].mxu0 %v468
        %v736 = vpop.f32.mrb[0].mxu0
        %v737 = vadd.f32 %v697, %v736
        %v738 = vpop.f32.mrb[0].mxu0
        %v739 = vpop.f32.mrb[0].mxu0
        %v740 = vpop.f32.mrb[0].mxu0
        %741 = vdwg.mxu0
        %v742 = vlaneseq
        %v743 = vshrl.u32 %v742, 7
        %v744 = vsub.s32 2, %v743
        %v745 = vrot.slane %v257, %v744
        %v746 = vmul.f32 %v737, %v745
        %v747 = vlaneseq
        %v748 = vshrl.u32 %v747, 7
        %v749 = vsub.s32 3, %v748
        %v750 = vrot.slane %v257, %v749
        %v751 = vadd.f32 %v746, %v750
        %v752 = vadd.f32 %v751, %v404
        %v753 = vmax.f32 %v752, 0.0
        %754 = vst [vmem:[%s254] sm:$0xff] %v753
        %s755 = sand.u32 %s120, 1
        %s756 = scalar_lea.sflag [#allocation5], %s755
        %s757 = sand.u32 %s120, 1
        %s758 = smul.addr %s757, 8
        %s759 = scalar_lea.vmem [#allocation11], %s758
        // Predicated region
        $region53: #{tpu_custom_call.1} parent=35 // pred_check
          %p760 = pneg %p130
        $region54: #{tpu_custom_call.1} parent=35 // pred_check_branch
          %762 = sbr.rel (%p760) target = $region56
        $region55: #{tpu_custom_call.1} parent=35 // pred_region
          %s764 = ssub.s32 128, 128
          %765 = vsyncadd %s756, %s764
          %s766 = smul.addr %s23, 128
          %s767 = scalar_lea.hbm %s4, %s766
          %s769 = sshll.u32 %s759, 4
          %s770 = int_to_ptr.vmem [resolvable:$true] %s769
          %772 = dma.vmem_to_hbm [thread:$0]  %s770, 128, %s767, %s756
        $region56: #{tpu_custom_call.1} parent=35 // pred_fallthru
          _
      $region36: #{tpu_custom_call.1} parent=5 // pred_fallthru
        _
      %p773 = scmp.le.s32.totalorder 2, %s18
      // Predicated region
      $region57: #{tpu_custom_call.1} parent=5 // pred_check
        %p774 = pneg %p773
      $region58: #{tpu_custom_call.1} parent=5 // pred_check_branch
        %776 = sbr.rel (%p774) target = $region60
      $region59: #{tpu_custom_call.1} parent=5 // pred_region
        %s777 = ssub.s32 %s18, 2
        // Predicated region
        $region61: #{tpu_custom_call.1} parent=59 // pred_check
          %p778 = pneg %p136
        $region62: #{tpu_custom_call.1} parent=59 // pred_check_branch
          %780 = sbr.rel (%p778) target = $region64
        $region63: #{tpu_custom_call.1} parent=59 // pred_region
          %s781 = sand.u32 %s121, 1
          %s782 = scalar_lea.sflag [#allocation5], %s781
          %s783 = sand.u32 %s121, 1
          %s784 = smul.addr %s783, 8
          %s785 = scalar_lea.vmem [#allocation11], %s784
          %786 = dma.done %s782, 128
        $region64: #{tpu_custom_call.1} parent=59 // pred_fallthru
          _
      $region60: #{tpu_custom_call.1} parent=5 // pred_fallthru
        _
    $region6: #{tpu_custom_call.1} parent=1 // loop_footer
      %s22 = sadd.s32 1, %s18
    $region7: #{tpu_custom_call.1} parent=1 // loop_footer_branch
      %17 = sbr.rel target = $region3
    $region8: #{tpu_custom_call.1} parent=1 // loop_exit
      _
    %787 = vsyncpa [#allocation4], 1
    %s788 = scalar_lea.sflag [#allocation4], 1
    %789 = vsyncpa %s788, 1
    %790 = vsyncpa [#allocation7], 1
    %791 = vsyncpa [#allocation10], 1
    %792 = vsyncpa [#allocation5], 1
    %s793 = scalar_lea.sflag [#allocation5], 1
    %794 = vsyncpa %s793, 1

</llo_original>
